<compile_context>
chip_gen: v5e
topology: v5e:2x2
jax: 0.10.0
libtpu: 0.0.40
codegen_flags: <defaults>
</compile_context>

<pallas_src>
import functools

import jax
import jax.numpy as jnp
from jax import lax
from jax.experimental import pallas as pl
from jax.experimental.pallas import tpu as pltpu


def _round_up(x, m):
    return (x + m - 1) // m * m


# ---------------------------------------------------------------------------
# Fused Conv1d -> ReLU -> MaxPool1d stack (shared by the Cell and Drug modules)
# ---------------------------------------------------------------------------
def _conv_stack_kernel(x_ref, *args, meta, tb):
    """Run one batch tile (tb samples, batch on the lane axis) through the stack.

    x_ref : (1, C_in0, L0*tb)   merged layout, column index = l*tb + b
    args  : w0, b0, w1, b1, ..., o_ref
              w_i : (C_out, K*C_in)  flattened as [o, k*C_in + i]
              b_i : (C_out, 1)
    o_ref : (C_out_last, L_pool_last, tb)
    """
    o_ref = args[-1]
    wb = args[:-1]
    n_layers = len(meta)

    h = x_ref[0].astype(jnp.float32)                       # (C_in0, L0*tb)
    for li, m in enumerate(meta):
        C_in, C_out, K = m["C_in"], m["C_out"], m["K"]
        L_out, pool, L_pool = m["L_out"], m["pool"], m["L_pool"]
        w = wb[2 * li][...]                                # (C_out, K*C_in)
        b = wb[2 * li + 1][...]                            # (C_out, 1)

        if C_in == 1:
            # Outer-product conv: VPU broadcast MAC, no MXU traffic.
            acc = jnp.zeros((C_out, L_out * tb), jnp.float32)
            for k in range(K):
                acc = acc + w[:, k:k + 1] * h[:, k * tb:(k + L_out) * tb]
        else:
            # im2col: K contiguous lane slices stacked on the sublane axis,
            # then a single MXU matmul with contraction dim K*C_in.
            patches = jnp.concatenate(
                [h[:, k * tb:(k + L_out) * tb] for k in range(K)], axis=0)
            acc = jnp.dot(w, patches, preferred_element_type=jnp.float32)

        y = jnp.maximum(acc + b, 0.0)                      # bias + ReLU

        # MaxPool1d(pool, stride=pool), floor mode: pool-way max over
        # contiguous lane slices of the (C_out, L_pool, pool*tb) view.
        y = y[:, : L_pool * pool * tb].reshape(C_out, L_pool, pool * tb)
        pooled = y[:, :, 0:tb]
        for p in range(1, pool):
            pooled = jnp.maximum(pooled, y[:, :, p * tb:(p + 1) * tb])

        if li == n_layers - 1:
            o_ref[...] = pooled.astype(o_ref.dtype)        # (C_out, L_pool, tb)
        else:
            h = pooled.reshape(C_out, L_pool * tb)


def conv_stack_forward(x, params, pools, *, batch_tile=128):
    """x: (B, C_in, L) float32 (PyTorch NCL). Returns flattened (B, C_out*L_pool)."""
    assert len(params) == len(pools)
    B, C_in0, L0 = x.shape
    x = jnp.asarray(x, jnp.float32)

    meta, flat_w, flat_b = [], [], []
    c_in, l_in = C_in0, L0
    for (w, b), pool in zip(params, pools):
        C_out, _, K = w.shape
        L_out = l_in - K + 1
        L_pool = L_out // pool
        meta.append(dict(C_in=c_in, C_out=C_out, K=K, L_out=L_out,
                         pool=pool, L_pool=L_pool))
        # (C_out, C_in, K) -> (C_out, K*C_in) with [o, k*C_in + i] = w[o, i, k]
        flat_w.append(jnp.asarray(w, jnp.float32)
                      .transpose(0, 2, 1).reshape(C_out, K * c_in))
        flat_b.append(jnp.asarray(b, jnp.float32).reshape(C_out, 1))
        c_in, l_in = C_out, L_pool
    C_f, L_f = meta[-1]["C_out"], meta[-1]["L_pool"]

    # Batch tiling: tb samples per grid step, batch on the lane axis.
    if B <= batch_tile:
        tb, B_pad = B, B
    else:
        tb, B_pad = batch_tile, _round_up(B, batch_tile)
    n_tiles = B_pad // tb
    if B_pad != B:
        x = jnp.pad(x, ((0, B_pad - B), (0, 0), (0, 0)))

    # (B_pad, C, L) -> (n_tiles, C, L*tb), merged column = l*tb + b_local.
    x_m = jnp.transpose(x, (1, 2, 0)).reshape(C_in0, L0, n_tiles, tb)
    x_m = jnp.transpose(x_m, (2, 0, 1, 3)).reshape(n_tiles, C_in0, L0 * tb)

    kernel = functools.partial(_conv_stack_kernel, meta=meta, tb=tb)
    in_specs = [pl.BlockSpec((1, C_in0, L0 * tb), lambda i: (i, 0, 0))]
    operands = [x_m]
    for w2, b2 in zip(flat_w, flat_b):
        in_specs.append(pl.BlockSpec(w2.shape, lambda i: (0, 0)))
        in_specs.append(pl.BlockSpec(b2.shape, lambda i: (0, 0)))
        operands += [w2, b2]

    out = pl.pallas_call(
        kernel,
        out_shape=jax.ShapeDtypeStruct((C_f, L_f, B_pad), jnp.float32),
        grid_spec=pltpu.PrefetchScalarGridSpec(
            num_scalar_prefetch=0,
            grid=(n_tiles,),
            in_specs=in_specs,
            out_specs=pl.BlockSpec((C_f, L_f, tb), lambda i: (0, 0, i)),
        ),
        compiler_params=pltpu.CompilerParams(
            dimension_semantics=("parallel",),
            vmem_limit_bytes=32 * 1024 * 1024,
        ),
    )(*operands)

    # (C_f, L_f, B_pad) -> (B, C_f*L_f)  == PyTorch x.view(-1, C*L) on NCL layout.
    feats = jnp.transpose(out, (2, 0, 1)).reshape(B_pad, C_f * L_f)
    return feats[:B]


# ---------------------------------------------------------------------------
# Fused Fusion MLP: concat -> fc1 -> ReLU -> fc2 -> ReLU -> fc3 -> sigmoid
# ---------------------------------------------------------------------------
def _fusion_kernel(x_ref, w1_ref, b1_ref, w2_ref, b2_ref, w3_ref, b3_ref, o_ref):
    x = x_ref[...].astype(jnp.float32)                              # (tb, D_in)
    h = jnp.dot(x, w1_ref[...], preferred_element_type=jnp.float32) + b1_ref[...]
    h = jnp.maximum(h, 0.0)
    h = jnp.dot(h, w2_ref[...], preferred_element_type=jnp.float32) + b2_ref[...]
    h = jnp.maximum(h, 0.0)
    z = jnp.dot(h, w3_ref[...], preferred_element_type=jnp.float32) + b3_ref[...]
    o_ref[...] = (1.0 / (1.0 + jnp.exp(-z))).astype(o_ref.dtype)


def fusion_forward(drug_feat, cell_feat, fusion_params, *, batch_tile=128):
    """drug_feat: (B, Dd), cell_feat: (B, Dc). Returns sigmoid(fc3(...)) of shape (B, fc3)."""
    x = jnp.concatenate([jnp.asarray(drug_feat, jnp.float32),
                         jnp.asarray(cell_feat, jnp.float32)], axis=1)
    B, D_in = x.shape
    (w1, b1), (w2, b2), (w3, b3) = fusion_params
    w1t = jnp.asarray(w1, jnp.float32).T
    w2t = jnp.asarray(w2, jnp.float32).T
    w3t = jnp.asarray(w3, jnp.float32).T
    b1r = jnp.asarray(b1, jnp.float32).reshape(1, -1)
    b2r = jnp.asarray(b2, jnp.float32).reshape(1, -1)
    b3r = jnp.asarray(b3, jnp.float32).reshape(1, -1)

    if B <= batch_tile:
        tb, B_pad = B, B
    else:
        tb, B_pad = batch_tile, _round_up(B, batch_tile)
    n_tiles = B_pad // tb
    if B_pad != B:
        x = jnp.pad(x, ((0, B_pad - B), (0, 0)))
    fc3_dim = w3t.shape[1]

    out = pl.pallas_call(
        _fusion_kernel,
        out_shape=jax.ShapeDtypeStruct((B_pad, fc3_dim), jnp.float32),
        grid_spec=pltpu.PrefetchScalarGridSpec(
            num_scalar_prefetch=0,
            grid=(n_tiles,),
            in_specs=[
                pl.BlockSpec((tb, D_in), lambda i: (i, 0)),
                pl.BlockSpec(w1t.shape, lambda i: (0, 0)),
                pl.BlockSpec(b1r.shape, lambda i: (0, 0)),
                pl.BlockSpec(w2t.shape, lambda i: (0, 0)),
                pl.BlockSpec(b2r.shape, lambda i: (0, 0)),
                pl.BlockSpec(w3t.shape, lambda i: (0, 0)),
                pl.BlockSpec(b3r.shape, lambda i: (0, 0)),
            ],
            out_specs=pl.BlockSpec((tb, fc3_dim), lambda i: (i, 0)),
        ),
        compiler_params=pltpu.CompilerParams(
            dimension_semantics=("parallel",),
            vmem_limit_bytes=32 * 1024 * 1024,
        ),
    )(x, w1t, b1r, w2t, b2r, w3t, b3r)
    return out[:B]


# ---------------------------------------------------------------------------
# Full tCNNs forward
# ---------------------------------------------------------------------------
def tcnns_forward(x_drug, cell_target, drug_params, cell_params, drug_pools,
                  cell_pools, fusion_params, *, input_drug_feature_channel=None):
    x_drug = jnp.asarray(x_drug, jnp.float32)
    # Drug.forward zero-pads missing leading channels before the backbone.
    if (input_drug_feature_channel is not None
            and x_drug.shape[1] != input_drug_feature_channel):
        pad_c = input_drug_feature_channel - x_drug.shape[1]
        zeros = jnp.zeros((x_drug.shape[0], pad_c, x_drug.shape[2]), jnp.float32)
        x_drug = jnp.concatenate([zeros, x_drug], axis=1)
    drug_feat = conv_stack_forward(x_drug, drug_params, drug_pools)
    # Cell.forward consumes data.target[:, None, :]
    cell_feat = conv_stack_forward(
        jnp.asarray(cell_target, jnp.float32)[:, None, :], cell_params, cell_pools)
    # Fusion (dropout is identity at inference).
    return fusion_forward(drug_feat, cell_feat, fusion_params)


# ---------------------------------------------------------------------------
# Pure-JAX reference (matches PyTorch semantics)
# ---------------------------------------------------------------------------
def conv_stack_reference(x, params, pools):
    h = jnp.asarray(x, jnp.float32)
    for (w, b), pool in zip(params, pools):
        y = lax.conv_general_dilated(
            h, jnp.asarray(w, jnp.float32), window_strides=(1,), padding="VALID",
            dimension_numbers=("NCH", "OIH", "NCH"),
            precision=lax.Precision.HIGHEST)
        y = jnp.maximum(y + jnp.asarray(b, jnp.float32).reshape(1, -1, 1), 0.0)
        y = lax.reduce_window(y, -jnp.inf, lax.max, (1, 1, pool), (1, 1, pool), "VALID")
        h = y
    return h.reshape(h.shape[0], -1)


def tcnns_reference(x_drug, x_cell_ncl, drug_params, cell_params, drug_pools,
                    cell_pools, fusion_params):
    fd = conv_stack_reference(x_drug, drug_params, drug_pools)
    fc = conv_stack_reference(x_cell_ncl, cell_params, cell_pools)
    h = jnp.concatenate([fd, fc], axis=1)
    (w1, b1), (w2, b2), (w3, b3) = fusion_params
    h = jnp.maximum(jnp.dot(h, w1.T, precision=lax.Precision.HIGHEST) + b1, 0.0)
    h = jnp.maximum(jnp.dot(h, w2.T, precision=lax.Precision.HIGHEST) + b2, 0.0)
    z = jnp.dot(h, w3.T, precision=lax.Precision.HIGHEST) + b3
    return jax.nn.sigmoid(z)


# ---------------------------------------------------------------------------
# Deterministic PyTorch-style parameter construction
# ---------------------------------------------------------------------------
def make_conv_params(key, input_channels, layer_hp):
    params, c_in = [], input_channels
    for c_out, k in zip(layer_hp["cnn_channels"], layer_hp["kernel_size"]):
        key, kw, kb = jax.random.split(key, 3)
        bound = 1.0 / float(c_in * k) ** 0.5
        w = jax.random.uniform(kw, (c_out, c_in, k), jnp.float32, -bound, bound)
        b = jax.random.uniform(kb, (c_out,), jnp.float32, -bound, bound)
        params.append((w, b))
        c_in = c_out
    return key, params


def make_linear_params(key, in_dim, out_dims):
    params, d_in = [], in_dim
    for d_out in out_dims:
        key, kw, kb = jax.random.split(key, 3)
        bound = 1.0 / float(d_in) ** 0.5
        w = jax.random.uniform(kw, (d_out, d_in), jnp.float32, -bound, bound)
        b = jax.random.uniform(kb, (d_out,), jnp.float32, -bound, bound)
        params.append((w, b))
        d_in = d_out
    return key, params


def conv_stack_output_dims(c_in, length, layer_hp):
    c, l = c_in, length
    for c_out, k, p in zip(layer_hp["cnn_channels"], layer_hp["kernel_size"],
                           layer_hp["maxpool1d"]):
        l = (l - k + 1) // p
        c = c_out
    return c, l


if __name__ == "__main__":
    key = jax.random.PRNGKey(0)

    # Small, module-consistent config.
    B = 2
    input_drug_feature_dim = 64
    input_drug_feature_channel = 4
    input_cell_feature_dim = 64
    layer_hp = {"cnn_channels": [4, 8, 16],
                "kernel_size": [5, 5, 5],
                "maxpool1d": [2, 2, 2]}
    pools = layer_hp["maxpool1d"]

    key, drug_params = make_conv_params(key, input_drug_feature_channel, layer_hp)
    key, cell_params = make_conv_params(key, 1, layer_hp)
    dc, dl = conv_stack_output_dims(input_drug_feature_channel,
                                    input_drug_feature_dim, layer_hp)
    cc, cl = conv_stack_output_dims(1, input_cell_feature_dim, layer_hp)
    key, fusion_params = make_linear_params(key, dc * dl + cc * cl, (32, 16, 1))

    def run_and_check(batch, key):
        key, kd, kc = jax.random.split(key, 3)
        x_drug = jax.random.normal(
            kd, (batch, input_drug_feature_channel, input_drug_feature_dim), jnp.float32)
        cell_target = jax.random.normal(
            kc, (batch, input_cell_feature_dim), jnp.float32)

        # Backbone features (one fused pallas_call) vs reference.
        cf = conv_stack_forward(cell_target[:, None, :], cell_params, pools)
        cf = jax.block_until_ready(cf)
        cf_ref = conv_stack_reference(cell_target[:, None, :], cell_params, pools)
        assert cf.shape == cf_ref.shape, (cf.shape, cf_ref.shape)
        assert jnp.allclose(cf, cf_ref, atol=1e-4, rtol=1e-4), float(
            jnp.max(jnp.abs(cf - cf_ref)))

        # Full model forward vs reference.
        out = tcnns_forward(x_drug, cell_target, drug_params, cell_params, pools,
                            pools, fusion_params,
                            input_drug_feature_channel=input_drug_feature_channel)
        out = jax.block_until_ready(out)
        ref = tcnns_reference(x_drug, cell_target[:, None, :], drug_params,
                              cell_params, pools, pools, fusion_params)
        assert out.shape == ref.shape == (batch, 1), (out.shape, ref.shape)
        assert jnp.allclose(out, ref, atol=1e-4, rtol=1e-4), float(
            jnp.max(jnp.abs(out - ref)))
        return key

    key = run_and_check(B, key)      # tiny batch: single tile (tb = B)
    key = run_and_check(260, key)    # padded multi-tile path: tb=128, lane-dense stores

    print("KERNEL_OK")
</pallas_src>

<mosaic_0001>
module attributes {stable_mosaic.version = 11 : i64} {
  func.func @_conv_stack_kernel(%arg0: i32, %arg1: memref<1x1x128xf32, #tpu.memory_space<vmem>>, %arg2: memref<4x5xf32, #tpu.memory_space<vmem>>, %arg3: memref<4x1xf32, #tpu.memory_space<vmem>>, %arg4: memref<8x20xf32, #tpu.memory_space<vmem>>, %arg5: memref<8x1xf32, #tpu.memory_space<vmem>>, %arg6: memref<16x40xf32, #tpu.memory_space<vmem>>, %arg7: memref<16x1xf32, #tpu.memory_space<vmem>>, %arg8: memref<16x4x2xf32, #tpu.memory_space<vmem>>) attributes {dimension_semantics = [#tpu.dimension_semantics<parallel>], iteration_bounds = array<i64: 1>, scalar_prefetch = 0 : i64, scratch_operands = 0 : i64, tpu.core_type = #tpu.core_type<tc>, window_params = [{transform_indices = @transform_0, window_bounds = array<i64: 1, 1, 128>}, {pipeline_mode = #tpu.pipeline_mode<synchronous>, transform_indices = @transform_1, window_bounds = array<i64: 4, 5>}, {pipeline_mode = #tpu.pipeline_mode<synchronous>, transform_indices = @transform_2, window_bounds = array<i64: 4, 1>}, {pipeline_mode = #tpu.pipeline_mode<synchronous>, transform_indices = @transform_3, window_bounds = array<i64: 8, 20>}, {pipeline_mode = #tpu.pipeline_mode<synchronous>, transform_indices = @transform_4, window_bounds = array<i64: 8, 1>}, {pipeline_mode = #tpu.pipeline_mode<synchronous>, transform_indices = @transform_5, window_bounds = array<i64: 16, 40>}, {pipeline_mode = #tpu.pipeline_mode<synchronous>, transform_indices = @transform_6, window_bounds = array<i64: 16, 1>}, {transform_indices = @transform_7, window_bounds = array<i64: 16, 4, 2>}]} {
    %c0 = arith.constant 0 : index
    %c0_0 = arith.constant 0 : index
    %c0_1 = arith.constant 0 : index
    %0 = vector.load %arg1[%c0, %c0_0, %c0_1] : memref<1x1x128xf32, #tpu.memory_space<vmem>>, vector<1x1x128xf32>
    %1 = vector.shape_cast %0 : vector<1x1x128xf32> to vector<1x128xf32>
    %c0_2 = arith.constant 0 : index
    %c0_3 = arith.constant 0 : index
    %2 = vector.load %arg2[%c0_2, %c0_3] : memref<4x5xf32, #tpu.memory_space<vmem>>, vector<4x5xf32>
    %c0_4 = arith.constant 0 : index
    %c0_5 = arith.constant 0 : index
    %3 = vector.load %arg3[%c0_4, %c0_5] : memref<4x1xf32, #tpu.memory_space<vmem>>, vector<4x1xf32>
    %cst = arith.constant 0.000000e+00 : f32
    %4 = vector.broadcast %cst : f32 to vector<4x120xf32>
    %5 = vector.extract_strided_slice %2 {offsets = [0, 0], sizes = [4, 1], strides = [1, 1]} : vector<4x5xf32> to vector<4x1xf32>
    %6 = vector.extract_strided_slice %1 {offsets = [0, 0], sizes = [1, 120], strides = [1, 1]} : vector<1x128xf32> to vector<1x120xf32>
    %7 = vector.broadcast %5 : vector<4x1xf32> to vector<4x120xf32>
    %8 = vector.broadcast %6 : vector<1x120xf32> to vector<4x120xf32>
    %9 = arith.mulf %7, %8 : vector<4x120xf32>
    %10 = arith.addf %4, %9 : vector<4x120xf32>
    %11 = vector.extract_strided_slice %2 {offsets = [0, 1], sizes = [4, 1], strides = [1, 1]} : vector<4x5xf32> to vector<4x1xf32>
    %12 = vector.extract_strided_slice %1 {offsets = [0, 2], sizes = [1, 120], strides = [1, 1]} : vector<1x128xf32> to vector<1x120xf32>
    %13 = vector.broadcast %11 : vector<4x1xf32> to vector<4x120xf32>
    %14 = vector.broadcast %12 : vector<1x120xf32> to vector<4x120xf32>
    %15 = arith.mulf %13, %14 : vector<4x120xf32>
    %16 = arith.addf %10, %15 : vector<4x120xf32>
    %17 = vector.extract_strided_slice %2 {offsets = [0, 2], sizes = [4, 1], strides = [1, 1]} : vector<4x5xf32> to vector<4x1xf32>
    %18 = vector.extract_strided_slice %1 {offsets = [0, 4], sizes = [1, 120], strides = [1, 1]} : vector<1x128xf32> to vector<1x120xf32>
    %19 = vector.broadcast %17 : vector<4x1xf32> to vector<4x120xf32>
    %20 = vector.broadcast %18 : vector<1x120xf32> to vector<4x120xf32>
    %21 = arith.mulf %19, %20 : vector<4x120xf32>
    %22 = arith.addf %16, %21 : vector<4x120xf32>
    %23 = vector.extract_strided_slice %2 {offsets = [0, 3], sizes = [4, 1], strides = [1, 1]} : vector<4x5xf32> to vector<4x1xf32>
    %24 = vector.extract_strided_slice %1 {offsets = [0, 6], sizes = [1, 120], strides = [1, 1]} : vector<1x128xf32> to vector<1x120xf32>
    %25 = vector.broadcast %23 : vector<4x1xf32> to vector<4x120xf32>
    %26 = vector.broadcast %24 : vector<1x120xf32> to vector<4x120xf32>
    %27 = arith.mulf %25, %26 : vector<4x120xf32>
    %28 = arith.addf %22, %27 : vector<4x120xf32>
    %29 = vector.extract_strided_slice %2 {offsets = [0, 4], sizes = [4, 1], strides = [1, 1]} : vector<4x5xf32> to vector<4x1xf32>
    %30 = vector.extract_strided_slice %1 {offsets = [0, 8], sizes = [1, 120], strides = [1, 1]} : vector<1x128xf32> to vector<1x120xf32>
    %31 = vector.broadcast %29 : vector<4x1xf32> to vector<4x120xf32>
    %32 = vector.broadcast %30 : vector<1x120xf32> to vector<4x120xf32>
    %33 = arith.mulf %31, %32 : vector<4x120xf32>
    %34 = arith.addf %28, %33 : vector<4x120xf32>
    %35 = vector.broadcast %3 : vector<4x1xf32> to vector<4x120xf32>
    %36 = arith.addf %34, %35 : vector<4x120xf32>
    %cst_6 = arith.constant 0.000000e+00 : f32
    %37 = vector.broadcast %cst_6 : f32 to vector<4x120xf32>
    %38 = arith.maximumf %36, %37 : vector<4x120xf32>
    %39 = vector.shape_cast %38 : vector<4x120xf32> to vector<4x30x4xf32>
    %40 = vector.extract_strided_slice %39 {offsets = [0, 0, 0], sizes = [4, 30, 2], strides = [1, 1, 1]} : vector<4x30x4xf32> to vector<4x30x2xf32>
    %41 = vector.extract_strided_slice %39 {offsets = [0, 0, 2], sizes = [4, 30, 2], strides = [1, 1, 1]} : vector<4x30x4xf32> to vector<4x30x2xf32>
    %42 = arith.maximumf %40, %41 : vector<4x30x2xf32>
    %43 = vector.shape_cast %42 : vector<4x30x2xf32> to vector<4x60xf32>
    %c0_7 = arith.constant 0 : index
    %c0_8 = arith.constant 0 : index
    %44 = vector.load %arg4[%c0_7, %c0_8] : memref<8x20xf32, #tpu.memory_space<vmem>>, vector<8x20xf32>
    %c0_9 = arith.constant 0 : index
    %c0_10 = arith.constant 0 : index
    %45 = vector.load %arg5[%c0_9, %c0_10] : memref<8x1xf32, #tpu.memory_space<vmem>>, vector<8x1xf32>
    %46 = vector.extract_strided_slice %43 {offsets = [0, 0], sizes = [4, 52], strides = [1, 1]} : vector<4x60xf32> to vector<4x52xf32>
    %47 = vector.extract_strided_slice %43 {offsets = [0, 2], sizes = [4, 52], strides = [1, 1]} : vector<4x60xf32> to vector<4x52xf32>
    %48 = vector.extract_strided_slice %43 {offsets = [0, 4], sizes = [4, 52], strides = [1, 1]} : vector<4x60xf32> to vector<4x52xf32>
    %49 = vector.extract_strided_slice %43 {offsets = [0, 6], sizes = [4, 52], strides = [1, 1]} : vector<4x60xf32> to vector<4x52xf32>
    %50 = vector.extract_strided_slice %43 {offsets = [0, 8], sizes = [4, 52], strides = [1, 1]} : vector<4x60xf32> to vector<4x52xf32>
    %51 = tpu.concatenate %46, %47, %48, %49, %50 in 0 : vector<4x52xf32>, vector<4x52xf32>, vector<4x52xf32>, vector<4x52xf32>, vector<4x52xf32> -> vector<20x52xf32>
    %cst_11 = arith.constant dense<0.000000e+00> : vector<8x52xf32>
    %52 = tpu.matmul %44, %51, %cst_11 {dimension_numbers = #tpu.dot_dimension_numbers<[1], [0], [0], [1], [0, 0, 1, 1], [], []>} : vector<8x20xf32>, vector<20x52xf32>, vector<8x52xf32> -> vector<8x52xf32>
    %53 = vector.broadcast %45 : vector<8x1xf32> to vector<8x52xf32>
    %54 = arith.addf %52, %53 : vector<8x52xf32>
    %cst_12 = arith.constant 0.000000e+00 : f32
    %55 = vector.broadcast %cst_12 : f32 to vector<8x52xf32>
    %56 = arith.maximumf %54, %55 : vector<8x52xf32>
    %57 = vector.shape_cast %56 : vector<8x52xf32> to vector<8x13x4xf32>
    %58 = vector.extract_strided_slice %57 {offsets = [0, 0, 0], sizes = [8, 13, 2], strides = [1, 1, 1]} : vector<8x13x4xf32> to vector<8x13x2xf32>
    %59 = vector.extract_strided_slice %57 {offsets = [0, 0, 2], sizes = [8, 13, 2], strides = [1, 1, 1]} : vector<8x13x4xf32> to vector<8x13x2xf32>
    %60 = arith.maximumf %58, %59 : vector<8x13x2xf32>
    %61 = vector.shape_cast %60 : vector<8x13x2xf32> to vector<8x26xf32>
    %c0_13 = arith.constant 0 : index
    %c0_14 = arith.constant 0 : index
    %62 = vector.load %arg6[%c0_13, %c0_14] : memref<16x40xf32, #tpu.memory_space<vmem>>, vector<16x40xf32>
    %c0_15 = arith.constant 0 : index
    %c0_16 = arith.constant 0 : index
    %63 = vector.load %arg7[%c0_15, %c0_16] : memref<16x1xf32, #tpu.memory_space<vmem>>, vector<16x1xf32>
    %64 = vector.extract_strided_slice %61 {offsets = [0, 0], sizes = [8, 18], strides = [1, 1]} : vector<8x26xf32> to vector<8x18xf32>
    %65 = vector.extract_strided_slice %61 {offsets = [0, 2], sizes = [8, 18], strides = [1, 1]} : vector<8x26xf32> to vector<8x18xf32>
    %66 = vector.extract_strided_slice %61 {offsets = [0, 4], sizes = [8, 18], strides = [1, 1]} : vector<8x26xf32> to vector<8x18xf32>
    %67 = vector.extract_strided_slice %61 {offsets = [0, 6], sizes = [8, 18], strides = [1, 1]} : vector<8x26xf32> to vector<8x18xf32>
    %68 = vector.extract_strided_slice %61 {offsets = [0, 8], sizes = [8, 18], strides = [1, 1]} : vector<8x26xf32> to vector<8x18xf32>
    %69 = tpu.concatenate %64, %65, %66, %67, %68 in 0 : vector<8x18xf32>, vector<8x18xf32>, vector<8x18xf32>, vector<8x18xf32>, vector<8x18xf32> -> vector<40x18xf32>
    %cst_17 = arith.constant dense<0.000000e+00> : vector<16x18xf32>
    %70 = tpu.matmul %62, %69, %cst_17 {dimension_numbers = #tpu.dot_dimension_numbers<[1], [0], [0], [1], [0, 0, 1, 1], [], []>} : vector<16x40xf32>, vector<40x18xf32>, vector<16x18xf32> -> vector<16x18xf32>
    %71 = vector.broadcast %63 : vector<16x1xf32> to vector<16x18xf32>
    %72 = arith.addf %70, %71 : vector<16x18xf32>
    %cst_18 = arith.constant 0.000000e+00 : f32
    %73 = vector.broadcast %cst_18 : f32 to vector<16x18xf32>
    %74 = arith.maximumf %72, %73 : vector<16x18xf32>
    %75 = vector.extract_strided_slice %74 {offsets = [0, 0], sizes = [16, 16], strides = [1, 1]} : vector<16x18xf32> to vector<16x16xf32>
    %76 = vector.shape_cast %75 : vector<16x16xf32> to vector<16x4x4xf32>
    %77 = vector.extract_strided_slice %76 {offsets = [0, 0, 0], sizes = [16, 4, 2], strides = [1, 1, 1]} : vector<16x4x4xf32> to vector<16x4x2xf32>
    %78 = vector.extract_strided_slice %76 {offsets = [0, 0, 2], sizes = [16, 4, 2], strides = [1, 1, 1]} : vector<16x4x4xf32> to vector<16x4x2xf32>
    %79 = arith.maximumf %77, %78 : vector<16x4x2xf32>
    %c0_19 = arith.constant 0 : index
    %c0_20 = arith.constant 0 : index
    %c0_21 = arith.constant 0 : index
    %80 = vector.load %arg8[%c0_19, %c0_20, %c0_21] : memref<16x4x2xf32, #tpu.memory_space<vmem>>, vector<16x4x2xf32>
    tpu.vector_store %arg8[%c0_19, %c0_20, %c0_21], %79 {strides = array<i32>} : memref<16x4x2xf32, #tpu.memory_space<vmem>>, vector<16x4x2xf32>,
    return
  }
  func.func @transform_0(%arg0: i32) -> (i32, i32, i32) {
    %c0_i32 = arith.constant 0 : i32
    %c0_i32_0 = arith.constant 0 : i32
    %c0_i32_1 = arith.constant 0 : i32
    return %arg0, %c0_i32, %c0_i32_0 : i32, i32, i32
  }
  func.func @transform_1(%arg0: i32) -> (i32, i32) {
    %c0_i32 = arith.constant 0 : i32
    %c0_i32_0 = arith.constant 0 : i32
    %c0_i32_1 = arith.constant 0 : i32
    return %c0_i32, %c0_i32_0 : i32, i32
  }
  func.func @transform_2(%arg0: i32) -> (i32, i32) {
    %c0_i32 = arith.constant 0 : i32
    %c0_i32_0 = arith.constant 0 : i32
    %c0_i32_1 = arith.constant 0 : i32
    return %c0_i32, %c0_i32_0 : i32, i32
  }
  func.func @transform_3(%arg0: i32) -> (i32, i32) {
    %c0_i32 = arith.constant 0 : i32
    %c0_i32_0 = arith.constant 0 : i32
    %c0_i32_1 = arith.constant 0 : i32
    return %c0_i32, %c0_i32_0 : i32, i32
  }
  func.func @transform_4(%arg0: i32) -> (i32, i32) {
    %c0_i32 = arith.constant 0 : i32
    %c0_i32_0 = arith.constant 0 : i32
    %c0_i32_1 = arith.constant 0 : i32
    return %c0_i32, %c0_i32_0 : i32, i32
  }
  func.func @transform_5(%arg0: i32) -> (i32, i32) {
    %c0_i32 = arith.constant 0 : i32
    %c0_i32_0 = arith.constant 0 : i32
    %c0_i32_1 = arith.constant 0 : i32
    return %c0_i32, %c0_i32_0 : i32, i32
  }
  func.func @transform_6(%arg0: i32) -> (i32, i32) {
    %c0_i32 = arith.constant 0 : i32
    %c0_i32_0 = arith.constant 0 : i32
    %c0_i32_1 = arith.constant 0 : i32
    return %c0_i32, %c0_i32_0 : i32, i32
  }
  func.func @transform_7(%arg0: i32) -> (i32, i32, i32) {
    %c0_i32 = arith.constant 0 : i32
    %c0_i32_0 = arith.constant 0 : i32
    %c0_i32_1 = arith.constant 0 : i32
    return %c0_i32, %c0_i32_0, %arg0 : i32, i32, i32
  }
}

</mosaic_0001>

<llo_original>
// kernel: tpu_custom_call.1
$region0: #{tpu_custom_call.1}
  #allocation0 [shape = 'u32[]', space=smem, size = 0x4, offset = 0x4, fixed_abs, tag = 'smem constant byte address 0x4 - core index']
  #allocation1 [shape = 'u32[72,128]{1,0:T(1,128)}', space=vmem, size = 0x9000, scoped, tag = 'internal scratch']
  %s0 = inlined_call_operand.vmem [shape: f32[1,1,128], index: 0, kind: input, shape index: {}]
  %s1 = inlined_call_operand.vmem [shape: f32[4,5], index: 1, kind: input, shape index: {}]
  %s2 = inlined_call_operand.vmem [shape: f32[4,1], index: 2, kind: input, shape index: {}]
  %s3 = inlined_call_operand.vmem [shape: f32[8,20], index: 3, kind: input, shape index: {}]
  %s4 = inlined_call_operand.vmem [shape: f32[8,1], index: 4, kind: input, shape index: {}]
  %s5 = inlined_call_operand.vmem [shape: f32[16,40], index: 5, kind: input, shape index: {}]
  %s6 = inlined_call_operand.vmem [shape: f32[16,1], index: 6, kind: input, shape index: {}]
  %s7 = inlined_call_operand.vmem [shape: f32[16,4,2], index: 7, kind: output, shape index: {}]
  %s8 = sld [smem:[#allocation0]]
  $region38: #{tpu_custom_call.1} parent=0
    _
  %s10 = ssub.s32 1, %s8
  %s11 = scalar_select 0, %s10, %s8
  // Predicated region
  $region2: #{tpu_custom_call.1} parent=0 // pred_check
    _
  $region3: #{tpu_custom_call.1} parent=0 // pred_check_branch
    %13 = sbr.rel (0) target = $region5
  $region4: #{tpu_custom_call.1} parent=0 // pred_region
    _
  $region5: #{tpu_custom_call.1} parent=0 // pred_fallthru
    _
  // Predicated region
  $region6: #{tpu_custom_call.1} parent=0 // pred_check
    _
  $region7: #{tpu_custom_call.1} parent=0 // pred_check_branch
    %15 = sbr.rel (0) target = $region9
  $region8: #{tpu_custom_call.1} parent=0 // pred_region
    _
  $region9: #{tpu_custom_call.1} parent=0 // pred_fallthru
    _
  // Predicated region
  $region10: #{tpu_custom_call.1} parent=0 // pred_check
    _
  $region11: #{tpu_custom_call.1} parent=0 // pred_check_branch
    %17 = sbr.rel (0) target = $region13
  $region12: #{tpu_custom_call.1} parent=0 // pred_region
    _
  $region13: #{tpu_custom_call.1} parent=0 // pred_fallthru
    _
  // Predicated region
  $region14: #{tpu_custom_call.1} parent=0 // pred_check
    _
  $region15: #{tpu_custom_call.1} parent=0 // pred_check_branch
    %19 = sbr.rel (0) target = $region17
  $region16: #{tpu_custom_call.1} parent=0 // pred_region
    _
  $region17: #{tpu_custom_call.1} parent=0 // pred_fallthru
    _
  // Predicated region
  $region18: #{tpu_custom_call.1} parent=0 // pred_check
    _
  $region19: #{tpu_custom_call.1} parent=0 // pred_check_branch
    %21 = sbr.rel (0) target = $region21
  $region20: #{tpu_custom_call.1} parent=0 // pred_region
    _
  $region21: #{tpu_custom_call.1} parent=0 // pred_fallthru
    _
  // Predicated region
  $region22: #{tpu_custom_call.1} parent=0 // pred_check
    _
  $region23: #{tpu_custom_call.1} parent=0 // pred_check_branch
    %23 = sbr.rel (0) target = $region25
  $region24: #{tpu_custom_call.1} parent=0 // pred_region
    _
  $region25: #{tpu_custom_call.1} parent=0 // pred_fallthru
    _
  // Predicated region
  $region26: #{tpu_custom_call.1} parent=0 // pred_check
    _
  $region27: #{tpu_custom_call.1} parent=0 // pred_check_branch
    %25 = sbr.rel (0) target = $region29
  $region28: #{tpu_custom_call.1} parent=0 // pred_region
    _
  $region29: #{tpu_custom_call.1} parent=0 // pred_fallthru
    _
  %v26 = vld [vmem:[%s0] sm:$0x1]
  %v27 = vld [vmem:[%s1] sm:$0xf]
  %v28 = vld [vmem:[%s2] sm:$0xf]
  %30 = vset.pattern.permute.xlu0 0
  %31 = vperm.xlu0 %30, %v27
  %v32 = vpop.permute.xlu0 %31
  %v35 = vperm.slane %v26, 0
  %v37 = vmul.f32 %v32, %v35
  %v38 = vadd.f32 %v37, 0.0
  %39 = vset.pattern.permute.xlu0 1
  %40 = vperm.xlu0 %39, %v27
  %v41 = vpop.permute.xlu0 %40
  %v43 = vmul.f32 %v41, %v35
  %45 = vrot.lane.b32.xlu0 %v43, 126
  %v46 = vpop.permute.xlu0 %45
  %v48 = vadd.f32 %v38, %v46
  %49 = vset.pattern.permute.xlu0 2
  %50 = vperm.xlu0 %49, %v27
  %v51 = vpop.permute.xlu0 %50
  %v53 = vmul.f32 %v51, %v35
  %55 = vrot.lane.b32.xlu0 %v53, 124
  %v56 = vpop.permute.xlu0 %55
  %v58 = vadd.f32 %v48, %v56
  %59 = vset.pattern.permute.xlu0 3
  %60 = vperm.xlu0 %59, %v27
  %v61 = vpop.permute.xlu0 %60
  %v63 = vmul.f32 %v61, %v35
  %65 = vrot.lane.b32.xlu0 %v63, 122
  %v66 = vpop.permute.xlu0 %65
  %v68 = vadd.f32 %v58, %v66
  %69 = vset.pattern.permute.xlu0 4
  %70 = vperm.xlu0 %69, %v27
  %v71 = vpop.permute.xlu0 %70
  %v73 = vmul.f32 %v71, %v35
  %75 = vrot.lane.b32.xlu0 %v73, 120
  %v76 = vpop.permute.xlu0 %75
  %v78 = vadd.f32 %v68, %v76
  %80 = vset.pattern.permute.xlu0 0
  %81 = vperm.xlu0 %80, %v28
  %v82 = vpop.permute.xlu0 %81
  %v84 = vadd.f32 %v78, %v82
  %v85 = vmax.f32 %v84, 0.0
  %87 = vrot.lane.b32.xlu0 %v85, 124
  %v88 = vpop.permute.xlu0 %87
  %90 = vrot.lane.b32.xlu0 %v85, 120
  %v91 = vpop.permute.xlu0 %90
  %93 = vrot.lane.b32.xlu0 %v85, 116
  %v94 = vpop.permute.xlu0 %93
  %96 = vrot.lane.b32.xlu0 %v85, 112
  %v97 = vpop.permute.xlu0 %96
  %99 = vrot.lane.b32.xlu0 %v85, 108
  %v100 = vpop.permute.xlu0 %99
  %102 = vrot.lane.b32.xlu0 %v85, 104
  %v103 = vpop.permute.xlu0 %102
  %105 = vrot.lane.b32.xlu0 %v85, 100
  %v106 = vpop.permute.xlu0 %105
  %108 = vrot.lane.b32.xlu0 %v85, 96
  %v109 = vpop.permute.xlu0 %108
  %111 = vrot.lane.b32.xlu0 %v85, 92
  %v112 = vpop.permute.xlu0 %111
  %114 = vrot.lane.b32.xlu0 %v85, 88
  %v115 = vpop.permute.xlu0 %114
  %117 = vrot.lane.b32.xlu0 %v85, 84
  %v118 = vpop.permute.xlu0 %117
  %120 = vrot.lane.b32.xlu0 %v85, 80
  %v121 = vpop.permute.xlu0 %120
  %123 = vrot.lane.b32.xlu0 %v85, 76
  %v124 = vpop.permute.xlu0 %123
  %126 = vrot.lane.b32.xlu0 %v85, 72
  %v127 = vpop.permute.xlu0 %126
  %129 = vrot.lane.b32.xlu0 %v85, 68
  %v130 = vpop.permute.xlu0 %129
  %132 = vrot.lane.b32.xlu0 %v85, 64
  %v133 = vpop.permute.xlu0 %132
  %135 = vrot.lane.b32.xlu0 %v85, 60
  %v136 = vpop.permute.xlu0 %135
  %138 = vrot.lane.b32.xlu0 %v85, 56
  %v139 = vpop.permute.xlu0 %138
  %141 = vrot.lane.b32.xlu0 %v85, 52
  %v142 = vpop.permute.xlu0 %141
  %144 = vrot.lane.b32.xlu0 %v85, 48
  %v145 = vpop.permute.xlu0 %144
  %147 = vrot.lane.b32.xlu0 %v85, 44
  %v148 = vpop.permute.xlu0 %147
  %150 = vrot.lane.b32.xlu0 %v85, 40
  %v151 = vpop.permute.xlu0 %150
  %153 = vrot.lane.b32.xlu0 %v85, 36
  %v154 = vpop.permute.xlu0 %153
  %156 = vrot.lane.b32.xlu0 %v85, 32
  %v157 = vpop.permute.xlu0 %156
  %159 = vrot.lane.b32.xlu0 %v85, 28
  %v160 = vpop.permute.xlu0 %159
  %162 = vrot.lane.b32.xlu0 %v85, 24
  %v163 = vpop.permute.xlu0 %162
  %165 = vrot.lane.b32.xlu0 %v85, 20
  %v166 = vpop.permute.xlu0 %165
  %168 = vrot.lane.b32.xlu0 %v85, 16
  %v169 = vpop.permute.xlu0 %168
  %170 = vrot.lane.b32.xlu0 %v85, 12
  %v171 = vpop.permute.xlu0 %170
  %v172 = vrot.slane %v91, 4
  %vm173 = vcmask 1047556
  %v174 = vsel %vm173, %v172, %v85
  %v176 = vunpack.c.l.s4 1983009808
  %v177 = vunpack.c.0.s8 %v176
  %v178 = vperm.slane %v174, %v177
  %v179 = vrot.slane %v94, 4
  %v180 = vsel %vm173, %v179, %v88
  %v182 = vunpack.c.l.s4 1983009808
  %v183 = vunpack.c.0.s8 %v182
  %v184 = vperm.slane %v180, %v183
  %v185 = vrot.slane %v103, 4
  %v186 = vsel %vm173, %v185, %v97
  %v188 = vunpack.c.l.s4 1983009808
  %v189 = vunpack.c.0.s8 %v188
  %v190 = vperm.slane %v186, %v189
  %v191 = vrot.slane %v106, 4
  %v192 = vsel %vm173, %v191, %v100
  %v194 = vunpack.c.l.s4 1983009808
  %v195 = vunpack.c.0.s8 %v194
  %v196 = vperm.slane %v192, %v195
  %v197 = vrot.slane %v184, 4
  %v198 = vsel %vm173, %v197, %v178
  %v199 = vrot.slane %v178, 4
  %v200 = vsel %vm173, %v184, %v199
  %v202 = vunpack.c.l.s4 1934713408
  %v203 = vunpack.c.0.s8 %v202
  %v204 = vperm.slane %v198, %v203
  %v206 = vunpack.c.l.s4 1934713408
  %v207 = vunpack.c.0.s8 %v206
  %v208 = vperm.slane %v200, %v207
  %v209 = vrot.slane %v196, 4
  %v210 = vsel %vm173, %v209, %v190
  %v211 = vrot.slane %v190, 4
  %v212 = vsel %vm173, %v196, %v211
  %v214 = vunpack.c.l.s4 1934713408
  %v215 = vunpack.c.0.s8 %v214
  %v216 = vperm.slane %v210, %v215
  %v218 = vunpack.c.l.s4 1934713408
  %v219 = vunpack.c.0.s8 %v218
  %v220 = vperm.slane %v212, %v219
  %v221 = vrot.slane %v216, 4
  %v222 = vsel %vm173, %v221, %v204
  %v223 = vrot.slane %v204, 4
  %v224 = vsel %vm173, %v216, %v223
  %v225 = vrot.slane %v220, 4
  %v226 = vsel %vm173, %v225, %v208
  %v227 = vrot.slane %v208, 4
  %v228 = vsel %vm173, %v220, %v227
  %v229 = vrot.slane %v115, 4
  %v230 = vsel %vm173, %v229, %v109
  %v232 = vunpack.c.l.s4 1983009808
  %v233 = vunpack.c.0.s8 %v232
  %v234 = vperm.slane %v230, %v233
  %v235 = vrot.slane %v118, 4
  %v236 = vsel %vm173, %v235, %v112
  %v238 = vunpack.c.l.s4 1983009808
  %v239 = vunpack.c.0.s8 %v238
  %v240 = vperm.slane %v236, %v239
  %v241 = vrot.slane %v127, 4
  %v242 = vsel %vm173, %v241, %v121
  %v244 = vunpack.c.l.s4 1983009808
  %v245 = vunpack.c.0.s8 %v244
  %v246 = vperm.slane %v242, %v245
  %v247 = vrot.slane %v130, 4
  %v248 = vsel %vm173, %v247, %v124
  %v250 = vunpack.c.l.s4 1983009808
  %v251 = vunpack.c.0.s8 %v250
  %v252 = vperm.slane %v248, %v251
  %v253 = vrot.slane %v240, 4
  %v254 = vsel %vm173, %v253, %v234
  %v255 = vrot.slane %v234, 4
  %v256 = vsel %vm173, %v240, %v255
  %v258 = vunpack.c.l.s4 1934713408
  %v259 = vunpack.c.0.s8 %v258
  %v260 = vperm.slane %v254, %v259
  %v262 = vunpack.c.l.s4 1934713408
  %v263 = vunpack.c.0.s8 %v262
  %v264 = vperm.slane %v256, %v263
  %v265 = vrot.slane %v252, 4
  %v266 = vsel %vm173, %v265, %v246
  %v267 = vrot.slane %v246, 4
  %v268 = vsel %vm173, %v252, %v267
  %v270 = vunpack.c.l.s4 1934713408
  %v271 = vunpack.c.0.s8 %v270
  %v272 = vperm.slane %v266, %v271
  %v274 = vunpack.c.l.s4 1934713408
  %v275 = vunpack.c.0.s8 %v274
  %v276 = vperm.slane %v268, %v275
  %v277 = vrot.slane %v272, 4
  %v278 = vsel %vm173, %v277, %v260
  %v279 = vrot.slane %v260, 4
  %v280 = vsel %vm173, %v272, %v279
  %v281 = vrot.slane %v276, 4
  %v282 = vsel %vm173, %v281, %v264
  %v283 = vrot.slane %v264, 4
  %v284 = vsel %vm173, %v276, %v283
  %v285 = vrot.slane %v139, 4
  %v286 = vsel %vm173, %v285, %v133
  %v288 = vunpack.c.l.s4 1983009808
  %v289 = vunpack.c.0.s8 %v288
  %v290 = vperm.slane %v286, %v289
  %v291 = vrot.slane %v142, 4
  %v292 = vsel %vm173, %v291, %v136
  %v294 = vunpack.c.l.s4 1983009808
  %v295 = vunpack.c.0.s8 %v294
  %v296 = vperm.slane %v292, %v295
  %v297 = vrot.slane %v151, 4
  %v298 = vsel %vm173, %v297, %v145
  %v300 = vunpack.c.l.s4 1983009808
  %v301 = vunpack.c.0.s8 %v300
  %v302 = vperm.slane %v298, %v301
  %v303 = vrot.slane %v154, 4
  %v304 = vsel %vm173, %v303, %v148
  %v306 = vunpack.c.l.s4 1983009808
  %v307 = vunpack.c.0.s8 %v306
  %v308 = vperm.slane %v304, %v307
  %v309 = vrot.slane %v296, 4
  %v310 = vsel %vm173, %v309, %v290
  %v311 = vrot.slane %v290, 4
  %v312 = vsel %vm173, %v296, %v311
  %v314 = vunpack.c.l.s4 1934713408
  %v315 = vunpack.c.0.s8 %v314
  %v316 = vperm.slane %v310, %v315
  %v318 = vunpack.c.l.s4 1934713408
  %v319 = vunpack.c.0.s8 %v318
  %v320 = vperm.slane %v312, %v319
  %v321 = vrot.slane %v308, 4
  %v322 = vsel %vm173, %v321, %v302
  %v323 = vrot.slane %v302, 4
  %v324 = vsel %vm173, %v308, %v323
  %v326 = vunpack.c.l.s4 1934713408
  %v327 = vunpack.c.0.s8 %v326
  %v328 = vperm.slane %v322, %v327
  %v330 = vunpack.c.l.s4 1934713408
  %v331 = vunpack.c.0.s8 %v330
  %v332 = vperm.slane %v324, %v331
  %v333 = vrot.slane %v328, 4
  %v334 = vsel %vm173, %v333, %v316
  %v335 = vrot.slane %v316, 4
  %v336 = vsel %vm173, %v328, %v335
  %v337 = vrot.slane %v332, 4
  %v338 = vsel %vm173, %v337, %v320
  %v339 = vrot.slane %v320, 4
  %v340 = vsel %vm173, %v332, %v339
  %v341 = vrot.slane %v163, 4
  %v342 = vsel %vm173, %v341, %v157
  %v344 = vunpack.c.l.s4 1983009808
  %v345 = vunpack.c.0.s8 %v344
  %v346 = vperm.slane %v342, %v345
  %v347 = vrot.slane %v166, 4
  %v348 = vsel %vm173, %v347, %v160
  %v350 = vunpack.c.l.s4 1983009808
  %v351 = vunpack.c.0.s8 %v350
  %v352 = vperm.slane %v348, %v351
  %v355 = vunpack.c.l.s4 1983009808
  %v356 = vunpack.c.0.s8 %v355
  %v357 = vperm.slane %v169, %v356
  %v360 = vunpack.c.l.s4 1983009808
  %v361 = vunpack.c.0.s8 %v360
  %v362 = vperm.slane %v171, %v361
  %v363 = vrot.slane %v352, 4
  %v364 = vsel %vm173, %v363, %v346
  %v365 = vrot.slane %v346, 4
  %v366 = vsel %vm173, %v352, %v365
  %v368 = vunpack.c.l.s4 1934713408
  %v369 = vunpack.c.0.s8 %v368
  %v370 = vperm.slane %v364, %v369
  %v372 = vunpack.c.l.s4 1934713408
  %v373 = vunpack.c.0.s8 %v372
  %v374 = vperm.slane %v366, %v373
  %v375 = vrot.slane %v362, 4
  %v376 = vsel %vm173, %v375, %v357
  %v377 = vrot.slane %v357, 4
  %v378 = vsel %vm173, %v362, %v377
  %v380 = vunpack.c.l.s4 1934713408
  %v381 = vunpack.c.0.s8 %v380
  %v382 = vperm.slane %v376, %v381
  %v384 = vunpack.c.l.s4 1934713408
  %v385 = vunpack.c.0.s8 %v384
  %v386 = vperm.slane %v378, %v385
  %v387 = vrot.slane %v382, 4
  %v388 = vsel %vm173, %v387, %v370
  %v389 = vrot.slane %v370, 4
  %v390 = vsel %vm173, %v382, %v389
  %v391 = vrot.slane %v386, 4
  %v392 = vsel %vm173, %v391, %v374
  %v393 = vrot.slane %v374, 4
  %v394 = vsel %vm173, %v386, %v393
  %411 = vrot.lane.b32.xlu0 %v222, 126
  %v412 = vpop.permute.xlu0 %411
  %413 = vrot.lane.b32.xlu0 %v278, 126
  %v414 = vpop.permute.xlu0 %413
  %415 = vrot.lane.b32.xlu0 %v334, 126
  %v416 = vpop.permute.xlu0 %415
  %417 = vrot.lane.b32.xlu0 %v388, 126
  %v418 = vpop.permute.xlu0 %417
  %419 = vrot.lane.b32.xlu0 %v224, 126
  %v420 = vpop.permute.xlu0 %419
  %421 = vrot.lane.b32.xlu0 %v280, 126
  %v422 = vpop.permute.xlu0 %421
  %423 = vrot.lane.b32.xlu0 %v336, 126
  %v424 = vpop.permute.xlu0 %423
  %425 = vrot.lane.b32.xlu0 %v390, 126
  %v426 = vpop.permute.xlu0 %425
  %427 = vrot.lane.b32.xlu0 %v226, 126
  %v428 = vpop.permute.xlu0 %427
  %429 = vrot.lane.b32.xlu0 %v282, 126
  %v430 = vpop.permute.xlu0 %429
  %431 = vrot.lane.b32.xlu0 %v338, 126
  %v432 = vpop.permute.xlu0 %431
  %433 = vrot.lane.b32.xlu0 %v392, 126
  %v434 = vpop.permute.xlu0 %433
  %435 = vrot.lane.b32.xlu0 %v228, 126
  %v436 = vpop.permute.xlu0 %435
  %437 = vrot.lane.b32.xlu0 %v284, 126
  %v438 = vpop.permute.xlu0 %437
  %439 = vrot.lane.b32.xlu0 %v340, 126
  %v440 = vpop.permute.xlu0 %439
  %441 = vrot.lane.b32.xlu0 %v394, 126
  %v442 = vpop.permute.xlu0 %441
  %v459 = vmax.f32 %v222, %v412
  %v460 = vmax.f32 %v278, %v414
  %v461 = vmax.f32 %v334, %v416
  %v462 = vmax.f32 %v388, %v418
  %v463 = vmax.f32 %v224, %v420
  %v464 = vmax.f32 %v280, %v422
  %v465 = vmax.f32 %v336, %v424
  %v466 = vmax.f32 %v390, %v426
  %v467 = vmax.f32 %v226, %v428
  %v468 = vmax.f32 %v282, %v430
  %v469 = vmax.f32 %v338, %v432
  %v470 = vmax.f32 %v392, %v434
  %v471 = vmax.f32 %v228, %v436
  %v472 = vmax.f32 %v284, %v438
  %v473 = vmax.f32 %v340, %v440
  %v474 = vmax.f32 %v394, %v442
  %v475 = vrot.slane %v467, 4
  %v476 = vsel %vm173, %v475, %v459
  %v477 = vrot.slane %v459, 4
  %v478 = vsel %vm173, %v467, %v477
  %v480 = vunpack.c.l.s4 1983009808
  %v481 = vunpack.c.0.s8 %v480
  %v482 = vperm.slane %v476, %v481
  %v484 = vunpack.c.l.s4 1983009808
  %v485 = vunpack.c.0.s8 %v484
  %v486 = vperm.slane %v478, %v485
  %v487 = vrot.slane %v471, 4
  %v488 = vsel %vm173, %v487, %v463
  %v489 = vrot.slane %v463, 4
  %v490 = vsel %vm173, %v471, %v489
  %v492 = vunpack.c.l.s4 1983009808
  %v493 = vunpack.c.0.s8 %v492
  %v494 = vperm.slane %v488, %v493
  %v496 = vunpack.c.l.s4 1983009808
  %v497 = vunpack.c.0.s8 %v496
  %v498 = vperm.slane %v490, %v497
  %v499 = vrot.slane %v494, 4
  %v500 = vsel %vm173, %v499, %v482
  %v501 = vrot.slane %v482, 4
  %v502 = vsel %vm173, %v494, %v501
  %v504 = vunpack.c.l.s4 1934713408
  %v505 = vunpack.c.0.s8 %v504
  %v506 = vperm.slane %v500, %v505
  %v508 = vunpack.c.l.s4 1934713408
  %v509 = vunpack.c.0.s8 %v508
  %v510 = vperm.slane %v502, %v509
  %v511 = vrot.slane %v498, 4
  %v512 = vsel %vm173, %v511, %v486
  %v513 = vrot.slane %v486, 4
  %v514 = vsel %vm173, %v498, %v513
  %v516 = vunpack.c.l.s4 1934713408
  %v517 = vunpack.c.0.s8 %v516
  %v518 = vperm.slane %v512, %v517
  %v520 = vunpack.c.l.s4 1934713408
  %v521 = vunpack.c.0.s8 %v520
  %v522 = vperm.slane %v514, %v521
  %v523 = vrot.slane %v506, 4
  %v524 = vsel %vm173, 0.0, %v523
  %v525 = vrot.slane %v510, 4
  %v526 = vsel %vm173, 0.0, %v525
  %v527 = vrot.slane %v518, 4
  %v528 = vsel %vm173, 0.0, %v527
  %v529 = vrot.slane %v522, 4
  %v530 = vsel %vm173, 0.0, %v529
  %v531 = vrot.slane %v468, 4
  %v532 = vsel %vm173, %v531, %v460
  %v533 = vrot.slane %v460, 4
  %v534 = vsel %vm173, %v468, %v533
  %v536 = vunpack.c.l.s4 1983009808
  %v537 = vunpack.c.0.s8 %v536
  %v538 = vperm.slane %v532, %v537
  %v540 = vunpack.c.l.s4 1983009808
  %v541 = vunpack.c.0.s8 %v540
  %v542 = vperm.slane %v534, %v541
  %v543 = vrot.slane %v472, 4
  %v544 = vsel %vm173, %v543, %v464
  %v545 = vrot.slane %v464, 4
  %v546 = vsel %vm173, %v472, %v545
  %v548 = vunpack.c.l.s4 1983009808
  %v549 = vunpack.c.0.s8 %v548
  %v550 = vperm.slane %v544, %v549
  %v552 = vunpack.c.l.s4 1983009808
  %v553 = vunpack.c.0.s8 %v552
  %v554 = vperm.slane %v546, %v553
  %v555 = vrot.slane %v550, 4
  %v556 = vsel %vm173, %v555, %v538
  %v557 = vrot.slane %v538, 4
  %v558 = vsel %vm173, %v550, %v557
  %v560 = vunpack.c.l.s4 1934713408
  %v561 = vunpack.c.0.s8 %v560
  %v562 = vperm.slane %v556, %v561
  %v564 = vunpack.c.l.s4 1934713408
  %v565 = vunpack.c.0.s8 %v564
  %v566 = vperm.slane %v558, %v565
  %v567 = vrot.slane %v554, 4
  %v568 = vsel %vm173, %v567, %v542
  %v569 = vrot.slane %v542, 4
  %v570 = vsel %vm173, %v554, %v569
  %v572 = vunpack.c.l.s4 1934713408
  %v573 = vunpack.c.0.s8 %v572
  %v574 = vperm.slane %v568, %v573
  %v576 = vunpack.c.l.s4 1934713408
  %v577 = vunpack.c.0.s8 %v576
  %v578 = vperm.slane %v570, %v577
  %v579 = vrot.slane %v562, 4
  %v580 = vsel %vm173, 0.0, %v579
  %v581 = vrot.slane %v566, 4
  %v582 = vsel %vm173, 0.0, %v581
  %v583 = vrot.slane %v574, 4
  %v584 = vsel %vm173, 0.0, %v583
  %v585 = vrot.slane %v578, 4
  %v586 = vsel %vm173, 0.0, %v585
  %v587 = vrot.slane %v469, 4
  %v588 = vsel %vm173, %v587, %v461
  %v589 = vrot.slane %v461, 4
  %v590 = vsel %vm173, %v469, %v589
  %v592 = vunpack.c.l.s4 1983009808
  %v593 = vunpack.c.0.s8 %v592
  %v594 = vperm.slane %v588, %v593
  %v596 = vunpack.c.l.s4 1983009808
  %v597 = vunpack.c.0.s8 %v596
  %v598 = vperm.slane %v590, %v597
  %v599 = vrot.slane %v473, 4
  %v600 = vsel %vm173, %v599, %v465
  %v601 = vrot.slane %v465, 4
  %v602 = vsel %vm173, %v473, %v601
  %v604 = vunpack.c.l.s4 1983009808
  %v605 = vunpack.c.0.s8 %v604
  %v606 = vperm.slane %v600, %v605
  %v608 = vunpack.c.l.s4 1983009808
  %v609 = vunpack.c.0.s8 %v608
  %v610 = vperm.slane %v602, %v609
  %v611 = vrot.slane %v606, 4
  %v612 = vsel %vm173, %v611, %v594
  %v613 = vrot.slane %v594, 4
  %v614 = vsel %vm173, %v606, %v613
  %v616 = vunpack.c.l.s4 1934713408
  %v617 = vunpack.c.0.s8 %v616
  %v618 = vperm.slane %v612, %v617
  %v620 = vunpack.c.l.s4 1934713408
  %v621 = vunpack.c.0.s8 %v620
  %v622 = vperm.slane %v614, %v621
  %v623 = vrot.slane %v610, 4
  %v624 = vsel %vm173, %v623, %v598
  %v625 = vrot.slane %v598, 4
  %v626 = vsel %vm173, %v610, %v625
  %v628 = vunpack.c.l.s4 1934713408
  %v629 = vunpack.c.0.s8 %v628
  %v630 = vperm.slane %v624, %v629
  %v632 = vunpack.c.l.s4 1934713408
  %v633 = vunpack.c.0.s8 %v632
  %v634 = vperm.slane %v626, %v633
  %v635 = vrot.slane %v618, 4
  %v636 = vsel %vm173, 0.0, %v635
  %v637 = vrot.slane %v622, 4
  %v638 = vsel %vm173, 0.0, %v637
  %v639 = vrot.slane %v630, 4
  %v640 = vsel %vm173, 0.0, %v639
  %v641 = vrot.slane %v634, 4
  %v642 = vsel %vm173, 0.0, %v641
  %v643 = vrot.slane %v470, 4
  %v644 = vsel %vm173, %v643, %v462
  %v645 = vrot.slane %v462, 4
  %v646 = vsel %vm173, %v470, %v645
  %v648 = vunpack.c.l.s4 1983009808
  %v649 = vunpack.c.0.s8 %v648
  %v650 = vperm.slane %v644, %v649
  %v652 = vunpack.c.l.s4 1983009808
  %v653 = vunpack.c.0.s8 %v652
  %v654 = vperm.slane %v646, %v653
  %v655 = vrot.slane %v474, 4
  %v656 = vsel %vm173, %v655, %v466
  %v657 = vrot.slane %v466, 4
  %v658 = vsel %vm173, %v474, %v657
  %v660 = vunpack.c.l.s4 1983009808
  %v661 = vunpack.c.0.s8 %v660
  %v662 = vperm.slane %v656, %v661
  %v664 = vunpack.c.l.s4 1983009808
  %v665 = vunpack.c.0.s8 %v664
  %v666 = vperm.slane %v658, %v665
  %v667 = vrot.slane %v662, 4
  %v668 = vsel %vm173, %v667, %v650
  %v669 = vrot.slane %v650, 4
  %v670 = vsel %vm173, %v662, %v669
  %v672 = vunpack.c.l.s4 1934713408
  %v673 = vunpack.c.0.s8 %v672
  %v674 = vperm.slane %v668, %v673
  %v676 = vunpack.c.l.s4 1934713408
  %v677 = vunpack.c.0.s8 %v676
  %v678 = vperm.slane %v670, %v677
  %v679 = vrot.slane %v666, 4
  %v680 = vsel %vm173, %v679, %v654
  %v682 = vunpack.c.l.s4 1934713408
  %v683 = vunpack.c.0.s8 %v682
  %v684 = vperm.slane %v680, %v683
  %v685 = vrot.slane %v674, 4
  %v686 = vsel %vm173, 0.0, %v685
  %v687 = vrot.slane %v678, 4
  %v688 = vsel %vm173, 0.0, %v687
  %v689 = vrot.slane %v684, 4
  %v690 = vsel %vm173, 0.0, %v689
  %692 = vrot.lane.b32.xlu0 %v524, 2
  %v693 = vpop.permute.xlu0 %692
  %696 = vrot.lane.b32.xlu0 %v510, 4
  %v697 = vpop.permute.xlu0 %696
  %700 = vrot.lane.b32.xlu0 %v526, 6
  %v701 = vpop.permute.xlu0 %700
  %704 = vrot.lane.b32.xlu0 %v518, 8
  %v705 = vpop.permute.xlu0 %704
  %708 = vrot.lane.b32.xlu0 %v528, 10
  %v709 = vpop.permute.xlu0 %708
  %712 = vrot.lane.b32.xlu0 %v522, 12
  %v713 = vpop.permute.xlu0 %712
  %716 = vrot.lane.b32.xlu0 %v530, 14
  %v717 = vpop.permute.xlu0 %716
  %720 = vrot.lane.b32.xlu0 %v562, 16
  %v721 = vpop.permute.xlu0 %720
  %724 = vrot.lane.b32.xlu0 %v580, 18
  %v725 = vpop.permute.xlu0 %724
  %728 = vrot.lane.b32.xlu0 %v566, 20
  %v729 = vpop.permute.xlu0 %728
  %732 = vrot.lane.b32.xlu0 %v582, 22
  %v733 = vpop.permute.xlu0 %732
  %736 = vrot.lane.b32.xlu0 %v574, 24
  %v737 = vpop.permute.xlu0 %736
  %740 = vrot.lane.b32.xlu0 %v584, 26
  %v741 = vpop.permute.xlu0 %740
  %744 = vrot.lane.b32.xlu0 %v578, 28
  %v745 = vpop.permute.xlu0 %744
  %748 = vrot.lane.b32.xlu0 %v586, 30
  %v749 = vpop.permute.xlu0 %748
  %752 = vrot.lane.b32.xlu0 %v618, 32
  %v753 = vpop.permute.xlu0 %752
  %756 = vrot.lane.b32.xlu0 %v636, 34
  %v757 = vpop.permute.xlu0 %756
  %760 = vrot.lane.b32.xlu0 %v622, 36
  %v761 = vpop.permute.xlu0 %760
  %764 = vrot.lane.b32.xlu0 %v638, 38
  %v765 = vpop.permute.xlu0 %764
  %768 = vrot.lane.b32.xlu0 %v630, 40
  %v769 = vpop.permute.xlu0 %768
  %772 = vrot.lane.b32.xlu0 %v640, 42
  %v773 = vpop.permute.xlu0 %772
  %776 = vrot.lane.b32.xlu0 %v634, 44
  %v777 = vpop.permute.xlu0 %776
  %780 = vrot.lane.b32.xlu0 %v642, 46
  %v781 = vpop.permute.xlu0 %780
  %784 = vrot.lane.b32.xlu0 %v674, 48
  %v785 = vpop.permute.xlu0 %784
  %788 = vrot.lane.b32.xlu0 %v686, 50
  %v789 = vpop.permute.xlu0 %788
  %792 = vrot.lane.b32.xlu0 %v678, 52
  %v793 = vpop.permute.xlu0 %792
  %796 = vrot.lane.b32.xlu0 %v688, 54
  %v797 = vpop.permute.xlu0 %796
  %800 = vrot.lane.b32.xlu0 %v684, 56
  %v801 = vpop.permute.xlu0 %800
  %804 = vrot.lane.b32.xlu0 %v690, 58
  %v805 = vpop.permute.xlu0 %804
  %vm807 = vcmask 15360
  %v808 = vsel %vm807, %v506, %v693
  %vm809 = vcmask 31744
  %v810 = vsel %vm809, %v808, %v697
  %vm811 = vcmask 48128
  %v812 = vsel %vm811, %v810, %v701
  %vm813 = vcmask 64512
  %v814 = vsel %vm813, %v812, %v705
  %vm815 = vcmask 80896
  %v816 = vsel %vm815, %v814, %v709
  %vm817 = vcmask 97280
  %v818 = vsel %vm817, %v816, %v713
  %vm819 = vcmask 113664
  %v820 = vsel %vm819, %v818, %v717
  %vm821 = vcmask 130048
  %v822 = vsel %vm821, %v820, %v721
  %vm823 = vcmask 146432
  %v824 = vsel %vm823, %v822, %v725
  %vm825 = vcmask 162816
  %v826 = vsel %vm825, %v824, %v729
  %vm827 = vcmask 179200
  %v828 = vsel %vm827, %v826, %v733
  %vm829 = vcmask 195584
  %v830 = vsel %vm829, %v828, %v737
  %vm831 = vcmask 211968
  %v832 = vsel %vm831, %v830, %v741
  %vm833 = vcmask 228352
  %v834 = vsel %vm833, %v832, %v745
  %vm835 = vcmask 244736
  %v836 = vsel %vm835, %v834, %v749
  %vm837 = vcmask 261120
  %v838 = vsel %vm837, %v836, %v753
  %vm839 = vcmask 277504
  %v840 = vsel %vm839, %v838, %v757
  %vm841 = vcmask 293888
  %v842 = vsel %vm841, %v840, %v761
  %vm843 = vcmask 310272
  %v844 = vsel %vm843, %v842, %v765
  %vm845 = vcmask 326656
  %v846 = vsel %vm845, %v844, %v769
  %vm847 = vcmask 343040
  %v848 = vsel %vm847, %v846, %v773
  %vm849 = vcmask 359424
  %v850 = vsel %vm849, %v848, %v777
  %vm851 = vcmask 375808
  %v852 = vsel %vm851, %v850, %v781
  %vm853 = vcmask 392192
  %v854 = vsel %vm853, %v852, %v785
  %vm855 = vcmask 408576
  %v856 = vsel %vm855, %v854, %v789
  %vm857 = vcmask 424960
  %v858 = vsel %vm857, %v856, %v793
  %vm859 = vcmask 441344
  %v860 = vsel %vm859, %v858, %v797
  %vm861 = vcmask 457728
  %v862 = vsel %vm861, %v860, %v801
  %vm863 = vcmask 474112
  %v864 = vsel %vm863, %v862, %v805
  %v865 = vld [vmem:[%s3] sm:$0xff]
  %v866 = vld [vmem:[%s4] sm:$0xff]
  %v868 = vrot.slane %v864, 4
  %869 = vrot.lane.b32.xlu0 %v868, 126
  %v870 = vpop.permute.xlu0 %869
  %872 = vrot.lane.b32.xlu0 %v864, 124
  %v873 = vpop.permute.xlu0 %872
  %875 = vrot.lane.b32.xlu0 %v868, 122
  %v876 = vpop.permute.xlu0 %875
  %878 = vrot.lane.b32.xlu0 %v864, 120
  %v879 = vpop.permute.xlu0 %878
  %vm880 = vcmask 1043456
  %v881 = vsel %vm880, %v864, %v870
  %v882 = vsel %vm880, %v873, %v876
  %884 = vset.pattern.permute.xlu0 0
  %885 = vperm.xlu0 %884, %v866
  %v886 = vpop.permute.xlu0 %885
  %v889 = vsel %vm825, %v865, 0
  %v891 = vsel %vm880, %v879, 0
  %893 = vmatpush.msra.mxu0 0.0
  %894 = vmatpush.msra.mxu0 0.0
  %895 = vmatpush.msra.mxu0 0.0
  %896 = vmatpush.msra.mxu0 0.0
  %897 = vmatpush.msra.mxu0 0.0
  %898 = vmatpush.msra.mxu0 0.0
  %899 = vmatpush.msra.mxu0 0.0
  %900 = vmatpush.msra.mxu0 0.0
  %901 = vmatpush.msra.mxu0 0.0
  %902 = vmatpush.msra.mxu0 0.0
  %903 = vmatpush.msra.mxu0 0.0
  %904 = vmatpush.msra.mxu0 0.0
  %905 = vmatpush.msra.mxu0 0.0
  %906 = vmatpush.msra.mxu0 %v891
  %907 = vmatpush.msra.mxu0 %v882
  %908 = vmatpush.msra.mxu0 %v881
  %909 = vmatmul.f32.gmra.mxu0 %v889
  %v910 = vpop.f32.mrf.mxu0
  %v911 = vadd.f32 %v886, %v910
  %912 = vdwg.mxu0
  %v913 = vmax.f32 %v911, 0.0
  %915 = vrot.lane.b32.xlu0 %v913, 124
  %v916 = vpop.permute.xlu0 %915
  %918 = vrot.lane.b32.xlu0 %v913, 120
  %v919 = vpop.permute.xlu0 %918
  %921 = vrot.lane.b32.xlu0 %v913, 116
  %v922 = vpop.permute.xlu0 %921
  %924 = vrot.lane.b32.xlu0 %v913, 112
  %v925 = vpop.permute.xlu0 %924
  %927 = vrot.lane.b32.xlu0 %v913, 108
  %v928 = vpop.permute.xlu0 %927
  %930 = vrot.lane.b32.xlu0 %v913, 104
  %v931 = vpop.permute.xlu0 %930
  %933 = vrot.lane.b32.xlu0 %v913, 100
  %v934 = vpop.permute.xlu0 %933
  %936 = vrot.lane.b32.xlu0 %v913, 96
  %v937 = vpop.permute.xlu0 %936
  %939 = vrot.lane.b32.xlu0 %v913, 92
  %v940 = vpop.permute.xlu0 %939
  %942 = vrot.lane.b32.xlu0 %v913, 88
  %v943 = vpop.permute.xlu0 %942
  %945 = vrot.lane.b32.xlu0 %v913, 84
  %v946 = vpop.permute.xlu0 %945
  %948 = vrot.lane.b32.xlu0 %v913, 80
  %v949 = vpop.permute.xlu0 %948
  %v951 = vrot.slane %v919, 4
  %v952 = vsel %vm173, %v951, %v913
  %v953 = vrot.slane %v913, 4
  %v954 = vsel %vm173, %v919, %v953
  %v956 = vunpack.c.l.s4 1983009808
  %v957 = vunpack.c.0.s8 %v956
  %v958 = vperm.slane %v952, %v957
  %v960 = vunpack.c.l.s4 1983009808
  %v961 = vunpack.c.0.s8 %v960
  %v962 = vperm.slane %v954, %v961
  %v963 = vrot.slane %v922, 4
  %v964 = vsel %vm173, %v963, %v916
  %v965 = vrot.slane %v916, 4
  %v966 = vsel %vm173, %v922, %v965
  %v968 = vunpack.c.l.s4 1983009808
  %v969 = vunpack.c.0.s8 %v968
  %v970 = vperm.slane %v964, %v969
  %v972 = vunpack.c.l.s4 1983009808
  %v973 = vunpack.c.0.s8 %v972
  %v974 = vperm.slane %v966, %v973
  %v975 = vrot.slane %v931, 4
  %v976 = vsel %vm173, %v975, %v925
  %v977 = vrot.slane %v925, 4
  %v978 = vsel %vm173, %v931, %v977
  %v980 = vunpack.c.l.s4 1983009808
  %v981 = vunpack.c.0.s8 %v980
  %v982 = vperm.slane %v976, %v981
  %v984 = vunpack.c.l.s4 1983009808
  %v985 = vunpack.c.0.s8 %v984
  %v986 = vperm.slane %v978, %v985
  %v987 = vrot.slane %v934, 4
  %v988 = vsel %vm173, %v987, %v928
  %v989 = vrot.slane %v928, 4
  %v990 = vsel %vm173, %v934, %v989
  %v992 = vunpack.c.l.s4 1983009808
  %v993 = vunpack.c.0.s8 %v992
  %v994 = vperm.slane %v988, %v993
  %v996 = vunpack.c.l.s4 1983009808
  %v997 = vunpack.c.0.s8 %v996
  %v998 = vperm.slane %v990, %v997
  %v999 = vrot.slane %v970, 4
  %v1000 = vsel %vm173, %v999, %v958
  %v1001 = vrot.slane %v958, 4
  %v1002 = vsel %vm173, %v970, %v1001
  %v1004 = vunpack.c.l.s4 1934713408
  %v1005 = vunpack.c.0.s8 %v1004
  %v1006 = vperm.slane %v1000, %v1005
  %v1008 = vunpack.c.l.s4 1934713408
  %v1009 = vunpack.c.0.s8 %v1008
  %v1010 = vperm.slane %v1002, %v1009
  %v1011 = vrot.slane %v974, 4
  %v1012 = vsel %vm173, %v1011, %v962
  %v1013 = vrot.slane %v962, 4
  %v1014 = vsel %vm173, %v974, %v1013
  %v1016 = vunpack.c.l.s4 1934713408
  %v1017 = vunpack.c.0.s8 %v1016
  %v1018 = vperm.slane %v1012, %v1017
  %v1020 = vunpack.c.l.s4 1934713408
  %v1021 = vunpack.c.0.s8 %v1020
  %v1022 = vperm.slane %v1014, %v1021
  %v1023 = vrot.slane %v994, 4
  %v1024 = vsel %vm173, %v1023, %v982
  %v1025 = vrot.slane %v982, 4
  %v1026 = vsel %vm173, %v994, %v1025
  %v1028 = vunpack.c.l.s4 1934713408
  %v1029 = vunpack.c.0.s8 %v1028
  %v1030 = vperm.slane %v1024, %v1029
  %v1032 = vunpack.c.l.s4 1934713408
  %v1033 = vunpack.c.0.s8 %v1032
  %v1034 = vperm.slane %v1026, %v1033
  %v1035 = vrot.slane %v998, 4
  %v1036 = vsel %vm173, %v1035, %v986
  %v1037 = vrot.slane %v986, 4
  %v1038 = vsel %vm173, %v998, %v1037
  %v1040 = vunpack.c.l.s4 1934713408
  %v1041 = vunpack.c.0.s8 %v1040
  %v1042 = vperm.slane %v1036, %v1041
  %v1044 = vunpack.c.l.s4 1934713408
  %v1045 = vunpack.c.0.s8 %v1044
  %v1046 = vperm.slane %v1038, %v1045
  %v1047 = vrot.slane %v1030, 4
  %v1048 = vsel %vm173, %v1047, %v1006
  %v1049 = vrot.slane %v1006, 4
  %v1050 = vsel %vm173, %v1030, %v1049
  %v1051 = vrot.slane %v1034, 4
  %v1052 = vsel %vm173, %v1051, %v1010
  %v1053 = vrot.slane %v1010, 4
  %v1054 = vsel %vm173, %v1034, %v1053
  %v1055 = vrot.slane %v1042, 4
  %v1056 = vsel %vm173, %v1055, %v1018
  %v1057 = vrot.slane %v1018, 4
  %v1058 = vsel %vm173, %v1042, %v1057
  %v1059 = vrot.slane %v1046, 4
  %v1060 = vsel %vm173, %v1059, %v1022
  %v1061 = vrot.slane %v1022, 4
  %v1062 = vsel %vm173, %v1046, %v1061
  %v1063 = vrot.slane %v943, 4
  %v1064 = vsel %vm173, %v1063, %v937
  %v1065 = vrot.slane %v937, 4
  %v1066 = vsel %vm173, %v943, %v1065
  %v1068 = vunpack.c.l.s4 1983009808
  %v1069 = vunpack.c.0.s8 %v1068
  %v1070 = vperm.slane %v1064, %v1069
  %v1072 = vunpack.c.l.s4 1983009808
  %v1073 = vunpack.c.0.s8 %v1072
  %v1074 = vperm.slane %v1066, %v1073
  %v1075 = vrot.slane %v946, 4
  %v1076 = vsel %vm173, %v1075, %v940
  %v1077 = vrot.slane %v940, 4
  %v1078 = vsel %vm173, %v946, %v1077
  %v1080 = vunpack.c.l.s4 1983009808
  %v1081 = vunpack.c.0.s8 %v1080
  %v1082 = vperm.slane %v1076, %v1081
  %v1084 = vunpack.c.l.s4 1983009808
  %v1085 = vunpack.c.0.s8 %v1084
  %v1086 = vperm.slane %v1078, %v1085
  %v1087 = vrot.slane %v949, 4
  %v1088 = vsel %vm173, 0.0, %v1087
  %v1090 = vunpack.c.l.s4 1983009808
  %v1091 = vunpack.c.0.s8 %v1090
  %v1092 = vperm.slane %v949, %v1091
  %v1094 = vunpack.c.l.s4 1983009808
  %v1095 = vunpack.c.0.s8 %v1094
  %v1096 = vperm.slane %v1088, %v1095
  %v1097 = vrot.slane %v1082, 4
  %v1098 = vsel %vm173, %v1097, %v1070
  %v1099 = vrot.slane %v1070, 4
  %v1100 = vsel %vm173, %v1082, %v1099
  %v1102 = vunpack.c.l.s4 1934713408
  %v1103 = vunpack.c.0.s8 %v1102
  %v1104 = vperm.slane %v1098, %v1103
  %v1106 = vunpack.c.l.s4 1934713408
  %v1107 = vunpack.c.0.s8 %v1106
  %v1108 = vperm.slane %v1100, %v1107
  %v1109 = vrot.slane %v1086, 4
  %v1110 = vsel %vm173, %v1109, %v1074
  %v1111 = vrot.slane %v1074, 4
  %v1112 = vsel %vm173, %v1086, %v1111
  %v1114 = vunpack.c.l.s4 1934713408
  %v1115 = vunpack.c.0.s8 %v1114
  %v1116 = vperm.slane %v1110, %v1115
  %v1118 = vunpack.c.l.s4 1934713408
  %v1119 = vunpack.c.0.s8 %v1118
  %v1120 = vperm.slane %v1112, %v1119
  %v1121 = vrot.slane %v1092, 4
  %v1122 = vsel %vm173, 0.0, %v1121
  %v1124 = vunpack.c.l.s4 1934713408
  %v1125 = vunpack.c.0.s8 %v1124
  %v1126 = vperm.slane %v1092, %v1125
  %v1128 = vunpack.c.l.s4 1934713408
  %v1129 = vunpack.c.0.s8 %v1128
  %v1130 = vperm.slane %v1122, %v1129
  %v1131 = vrot.slane %v1096, 4
  %v1132 = vsel %vm173, 0.0, %v1131
  %v1134 = vunpack.c.l.s4 1934713408
  %v1135 = vunpack.c.0.s8 %v1134
  %v1136 = vperm.slane %v1096, %v1135
  %v1138 = vunpack.c.l.s4 1934713408
  %v1139 = vunpack.c.0.s8 %v1138
  %v1140 = vperm.slane %v1132, %v1139
  %v1141 = vrot.slane %v1126, 4
  %v1142 = vsel %vm173, %v1141, %v1104
  %v1143 = vrot.slane %v1104, 4
  %v1144 = vsel %vm173, %v1126, %v1143
  %v1145 = vrot.slane %v1130, 4
  %v1146 = vsel %vm173, %v1145, %v1108
  %v1147 = vrot.slane %v1108, 4
  %v1148 = vsel %vm173, %v1130, %v1147
  %v1149 = vrot.slane %v1136, 4
  %v1150 = vsel %vm173, %v1149, %v1116
  %v1151 = vrot.slane %v1116, 4
  %v1152 = vsel %vm173, %v1136, %v1151
  %v1153 = vrot.slane %v1140, 4
  %v1154 = vsel %vm173, %v1153, %v1120
  %v1155 = vrot.slane %v1120, 4
  %v1156 = vsel %vm173, %v1140, %v1155
  %1173 = vrot.lane.b32.xlu0 %v1048, 126
  %v1174 = vpop.permute.xlu0 %1173
  %1175 = vrot.lane.b32.xlu0 %v1142, 126
  %v1176 = vpop.permute.xlu0 %1175
  %1177 = vrot.lane.b32.xlu0 %v1050, 126
  %v1178 = vpop.permute.xlu0 %1177
  %1179 = vrot.lane.b32.xlu0 %v1144, 126
  %v1180 = vpop.permute.xlu0 %1179
  %1181 = vrot.lane.b32.xlu0 %v1052, 126
  %v1182 = vpop.permute.xlu0 %1181
  %1183 = vrot.lane.b32.xlu0 %v1146, 126
  %v1184 = vpop.permute.xlu0 %1183
  %1185 = vrot.lane.b32.xlu0 %v1054, 126
  %v1186 = vpop.permute.xlu0 %1185
  %1187 = vrot.lane.b32.xlu0 %v1148, 126
  %v1188 = vpop.permute.xlu0 %1187
  %1189 = vrot.lane.b32.xlu0 %v1056, 126
  %v1190 = vpop.permute.xlu0 %1189
  %1191 = vrot.lane.b32.xlu0 %v1150, 126
  %v1192 = vpop.permute.xlu0 %1191
  %1193 = vrot.lane.b32.xlu0 %v1058, 126
  %v1194 = vpop.permute.xlu0 %1193
  %1195 = vrot.lane.b32.xlu0 %v1152, 126
  %v1196 = vpop.permute.xlu0 %1195
  %1197 = vrot.lane.b32.xlu0 %v1060, 126
  %v1198 = vpop.permute.xlu0 %1197
  %1199 = vrot.lane.b32.xlu0 %v1154, 126
  %v1200 = vpop.permute.xlu0 %1199
  %1201 = vrot.lane.b32.xlu0 %v1062, 126
  %v1202 = vpop.permute.xlu0 %1201
  %1203 = vrot.lane.b32.xlu0 %v1156, 126
  %v1204 = vpop.permute.xlu0 %1203
  %v1221 = vmax.f32 %v1048, %v1174
  %v1222 = vmax.f32 %v1142, %v1176
  %v1223 = vmax.f32 %v1050, %v1178
  %v1224 = vmax.f32 %v1144, %v1180
  %v1225 = vmax.f32 %v1052, %v1182
  %v1226 = vmax.f32 %v1146, %v1184
  %v1227 = vmax.f32 %v1054, %v1186
  %v1228 = vmax.f32 %v1148, %v1188
  %v1229 = vmax.f32 %v1056, %v1190
  %v1230 = vmax.f32 %v1150, %v1192
  %v1231 = vmax.f32 %v1058, %v1194
  %v1232 = vmax.f32 %v1152, %v1196
  %v1233 = vmax.f32 %v1060, %v1198
  %v1234 = vmax.f32 %v1154, %v1200
  %v1235 = vmax.f32 %v1062, %v1202
  %v1236 = vmax.f32 %v1156, %v1204
  %v1237 = vrot.slane %v1225, 4
  %v1238 = vsel %vm173, %v1237, %v1221
  %v1239 = vrot.slane %v1221, 4
  %v1240 = vsel %vm173, %v1225, %v1239
  %v1242 = vunpack.c.l.s4 1983009808
  %v1243 = vunpack.c.0.s8 %v1242
  %v1244 = vperm.slane %v1238, %v1243
  %v1246 = vunpack.c.l.s4 1983009808
  %v1247 = vunpack.c.0.s8 %v1246
  %v1248 = vperm.slane %v1240, %v1247
  %v1249 = vrot.slane %v1227, 4
  %v1250 = vsel %vm173, %v1249, %v1223
  %v1251 = vrot.slane %v1223, 4
  %v1252 = vsel %vm173, %v1227, %v1251
  %v1254 = vunpack.c.l.s4 1983009808
  %v1255 = vunpack.c.0.s8 %v1254
  %v1256 = vperm.slane %v1250, %v1255
  %v1258 = vunpack.c.l.s4 1983009808
  %v1259 = vunpack.c.0.s8 %v1258
  %v1260 = vperm.slane %v1252, %v1259
  %v1261 = vrot.slane %v1233, 4
  %v1262 = vsel %vm173, %v1261, %v1229
  %v1263 = vrot.slane %v1229, 4
  %v1264 = vsel %vm173, %v1233, %v1263
  %v1266 = vunpack.c.l.s4 1983009808
  %v1267 = vunpack.c.0.s8 %v1266
  %v1268 = vperm.slane %v1262, %v1267
  %v1270 = vunpack.c.l.s4 1983009808
  %v1271 = vunpack.c.0.s8 %v1270
  %v1272 = vperm.slane %v1264, %v1271
  %v1273 = vrot.slane %v1235, 4
  %v1274 = vsel %vm173, %v1273, %v1231
  %v1275 = vrot.slane %v1231, 4
  %v1276 = vsel %vm173, %v1235, %v1275
  %v1278 = vunpack.c.l.s4 1983009808
  %v1279 = vunpack.c.0.s8 %v1278
  %v1280 = vperm.slane %v1274, %v1279
  %v1282 = vunpack.c.l.s4 1983009808
  %v1283 = vunpack.c.0.s8 %v1282
  %v1284 = vperm.slane %v1276, %v1283
  %v1285 = vrot.slane %v1256, 4
  %v1286 = vsel %vm173, %v1285, %v1244
  %v1287 = vrot.slane %v1244, 4
  %v1288 = vsel %vm173, %v1256, %v1287
  %v1290 = vunpack.c.l.s4 1934713408
  %v1291 = vunpack.c.0.s8 %v1290
  %v1292 = vperm.slane %v1286, %v1291
  %v1294 = vunpack.c.l.s4 1934713408
  %v1295 = vunpack.c.0.s8 %v1294
  %v1296 = vperm.slane %v1288, %v1295
  %v1297 = vrot.slane %v1260, 4
  %v1298 = vsel %vm173, %v1297, %v1248
  %v1299 = vrot.slane %v1248, 4
  %v1300 = vsel %vm173, %v1260, %v1299
  %v1302 = vunpack.c.l.s4 1934713408
  %v1303 = vunpack.c.0.s8 %v1302
  %v1304 = vperm.slane %v1298, %v1303
  %v1306 = vunpack.c.l.s4 1934713408
  %v1307 = vunpack.c.0.s8 %v1306
  %v1308 = vperm.slane %v1300, %v1307
  %v1309 = vrot.slane %v1280, 4
  %v1310 = vsel %vm173, %v1309, %v1268
  %v1311 = vrot.slane %v1268, 4
  %v1312 = vsel %vm173, %v1280, %v1311
  %v1314 = vunpack.c.l.s4 1934713408
  %v1315 = vunpack.c.0.s8 %v1314
  %v1316 = vperm.slane %v1310, %v1315
  %v1318 = vunpack.c.l.s4 1934713408
  %v1319 = vunpack.c.0.s8 %v1318
  %v1320 = vperm.slane %v1312, %v1319
  %v1321 = vrot.slane %v1284, 4
  %v1322 = vsel %vm173, %v1321, %v1272
  %v1323 = vrot.slane %v1272, 4
  %v1324 = vsel %vm173, %v1284, %v1323
  %v1326 = vunpack.c.l.s4 1934713408
  %v1327 = vunpack.c.0.s8 %v1326
  %v1328 = vperm.slane %v1322, %v1327
  %v1330 = vunpack.c.l.s4 1934713408
  %v1331 = vunpack.c.0.s8 %v1330
  %v1332 = vperm.slane %v1324, %v1331
  %v1333 = vrot.slane %v1316, 4
  %v1334 = vsel %vm173, %v1333, %v1292
  %v1335 = vrot.slane %v1292, 4
  %v1336 = vsel %vm173, %v1316, %v1335
  %v1337 = vrot.slane %v1320, 4
  %v1338 = vsel %vm173, %v1337, %v1296
  %v1339 = vrot.slane %v1296, 4
  %v1340 = vsel %vm173, %v1320, %v1339
  %v1341 = vrot.slane %v1328, 4
  %v1342 = vsel %vm173, %v1341, %v1304
  %v1343 = vrot.slane %v1304, 4
  %v1344 = vsel %vm173, %v1328, %v1343
  %v1345 = vrot.slane %v1332, 4
  %v1346 = vsel %vm173, %v1345, %v1308
  %v1347 = vrot.slane %v1308, 4
  %v1348 = vsel %vm173, %v1332, %v1347
  %v1349 = vrot.slane %v1226, 4
  %v1350 = vsel %vm173, %v1349, %v1222
  %v1351 = vrot.slane %v1222, 4
  %v1352 = vsel %vm173, %v1226, %v1351
  %v1354 = vunpack.c.l.s4 1983009808
  %v1355 = vunpack.c.0.s8 %v1354
  %v1356 = vperm.slane %v1350, %v1355
  %v1358 = vunpack.c.l.s4 1983009808
  %v1359 = vunpack.c.0.s8 %v1358
  %v1360 = vperm.slane %v1352, %v1359
  %v1361 = vrot.slane %v1228, 4
  %v1362 = vsel %vm173, %v1361, %v1224
  %v1363 = vrot.slane %v1224, 4
  %v1364 = vsel %vm173, %v1228, %v1363
  %v1366 = vunpack.c.l.s4 1983009808
  %v1367 = vunpack.c.0.s8 %v1366
  %v1368 = vperm.slane %v1362, %v1367
  %v1370 = vunpack.c.l.s4 1983009808
  %v1371 = vunpack.c.0.s8 %v1370
  %v1372 = vperm.slane %v1364, %v1371
  %v1373 = vrot.slane %v1234, 4
  %v1374 = vsel %vm173, %v1373, %v1230
  %v1375 = vrot.slane %v1230, 4
  %v1376 = vsel %vm173, %v1234, %v1375
  %v1378 = vunpack.c.l.s4 1983009808
  %v1379 = vunpack.c.0.s8 %v1378
  %v1380 = vperm.slane %v1374, %v1379
  %v1382 = vunpack.c.l.s4 1983009808
  %v1383 = vunpack.c.0.s8 %v1382
  %v1384 = vperm.slane %v1376, %v1383
  %v1385 = vrot.slane %v1236, 4
  %v1386 = vsel %vm173, %v1385, %v1232
  %v1387 = vrot.slane %v1232, 4
  %v1388 = vsel %vm173, %v1236, %v1387
  %v1390 = vunpack.c.l.s4 1983009808
  %v1391 = vunpack.c.0.s8 %v1390
  %v1392 = vperm.slane %v1386, %v1391
  %v1394 = vunpack.c.l.s4 1983009808
  %v1395 = vunpack.c.0.s8 %v1394
  %v1396 = vperm.slane %v1388, %v1395
  %v1397 = vrot.slane %v1368, 4
  %v1398 = vsel %vm173, %v1397, %v1356
  %v1399 = vrot.slane %v1356, 4
  %v1400 = vsel %vm173, %v1368, %v1399
  %v1402 = vunpack.c.l.s4 1934713408
  %v1403 = vunpack.c.0.s8 %v1402
  %v1404 = vperm.slane %v1398, %v1403
  %v1406 = vunpack.c.l.s4 1934713408
  %v1407 = vunpack.c.0.s8 %v1406
  %v1408 = vperm.slane %v1400, %v1407
  %v1409 = vrot.slane %v1372, 4
  %v1410 = vsel %vm173, %v1409, %v1360
  %v1412 = vunpack.c.l.s4 1934713408
  %v1413 = vunpack.c.0.s8 %v1412
  %v1414 = vperm.slane %v1410, %v1413
  %v1415 = vrot.slane %v1392, 4
  %v1416 = vsel %vm173, %v1415, %v1380
  %v1417 = vrot.slane %v1380, 4
  %v1418 = vsel %vm173, %v1392, %v1417
  %v1420 = vunpack.c.l.s4 1934713408
  %v1421 = vunpack.c.0.s8 %v1420
  %v1422 = vperm.slane %v1416, %v1421
  %v1424 = vunpack.c.l.s4 1934713408
  %v1425 = vunpack.c.0.s8 %v1424
  %v1426 = vperm.slane %v1418, %v1425
  %v1427 = vrot.slane %v1396, 4
  %v1428 = vsel %vm173, %v1427, %v1384
  %v1430 = vunpack.c.l.s4 1934713408
  %v1431 = vunpack.c.0.s8 %v1430
  %v1432 = vperm.slane %v1428, %v1431
  %v1433 = vrot.slane %v1422, 4
  %v1434 = vsel %vm173, %v1433, %v1404
  %v1435 = vrot.slane %v1404, 4
  %v1436 = vsel %vm173, %v1422, %v1435
  %v1437 = vrot.slane %v1426, 4
  %v1438 = vsel %vm173, %v1437, %v1408
  %v1439 = vrot.slane %v1408, 4
  %v1440 = vsel %vm173, %v1426, %v1439
  %v1441 = vrot.slane %v1432, 4
  %v1442 = vsel %vm173, %v1441, %v1414
  %1444 = vrot.lane.b32.xlu0 %v1336, 2
  %v1445 = vpop.permute.xlu0 %1444
  %1448 = vrot.lane.b32.xlu0 %v1338, 4
  %v1449 = vpop.permute.xlu0 %1448
  %1452 = vrot.lane.b32.xlu0 %v1340, 6
  %v1453 = vpop.permute.xlu0 %1452
  %1456 = vrot.lane.b32.xlu0 %v1342, 8
  %v1457 = vpop.permute.xlu0 %1456
  %1460 = vrot.lane.b32.xlu0 %v1344, 10
  %v1461 = vpop.permute.xlu0 %1460
  %1464 = vrot.lane.b32.xlu0 %v1346, 12
  %v1465 = vpop.permute.xlu0 %1464
  %1468 = vrot.lane.b32.xlu0 %v1348, 14
  %v1469 = vpop.permute.xlu0 %1468
  %1472 = vrot.lane.b32.xlu0 %v1434, 16
  %v1473 = vpop.permute.xlu0 %1472
  %1476 = vrot.lane.b32.xlu0 %v1436, 18
  %v1477 = vpop.permute.xlu0 %1476
  %1480 = vrot.lane.b32.xlu0 %v1438, 20
  %v1481 = vpop.permute.xlu0 %1480
  %1484 = vrot.lane.b32.xlu0 %v1440, 22
  %v1485 = vpop.permute.xlu0 %1484
  %1488 = vrot.lane.b32.xlu0 %v1442, 24
  %v1489 = vpop.permute.xlu0 %1488
  %v1491 = vsel %vm807, %v1334, %v1445
  %v1492 = vsel %vm809, %v1491, %v1449
  %v1493 = vsel %vm811, %v1492, %v1453
  %v1494 = vsel %vm813, %v1493, %v1457
  %v1495 = vsel %vm815, %v1494, %v1461
  %v1496 = vsel %vm817, %v1495, %v1465
  %v1497 = vsel %vm819, %v1496, %v1469
  %v1498 = vsel %vm821, %v1497, %v1473
  %v1499 = vsel %vm823, %v1498, %v1477
  %v1500 = vsel %vm825, %v1499, %v1481
  %v1501 = vsel %vm827, %v1500, %v1485
  %v1502 = vsel %vm829, %v1501, %v1489
  %v1503 = vld [vmem:[%s5] sm:$0xff]
  %v1504 = vld [vmem:[%s5 + $0x8] sm:$0xff]
  %v1505 = vld [vmem:[%s6] sm:$0xff]
  %v1506 = vld [vmem:[%s6 + $0x8] sm:$0xff]
  %1508 = vrot.lane.b32.xlu0 %v1502, 126
  %v1509 = vpop.permute.xlu0 %1508
  %1511 = vrot.lane.b32.xlu0 %v1502, 124
  %v1512 = vpop.permute.xlu0 %1511
  %1514 = vrot.lane.b32.xlu0 %v1502, 122
  %v1515 = vpop.permute.xlu0 %1514
  %1517 = vrot.lane.b32.xlu0 %v1502, 120
  %v1518 = vpop.permute.xlu0 %1517
  %1521 = vset.pattern.permute.xlu0 0
  %1522 = vperm.xlu0 %1521, %v1505
  %v1523 = vpop.permute.xlu0 %1522
  %1526 = vset.pattern.permute.xlu0 0
  %1527 = vperm.xlu0 %1526, %v1506
  %v1528 = vpop.permute.xlu0 %1527
  %v1531 = vsel %vm845, %v1503, 0
  %v1534 = vsel %vm845, %v1504, 0
  %1536 = vmatpush.msra.mxu0 0.0
  %1537 = vmatpush.msra.mxu0 0.0
  %1538 = vmatpush.msra.mxu0 0.0
  %1539 = vmatpush.msra.mxu0 0.0
  %1540 = vmatpush.msra.mxu0 0.0
  %1541 = vmatpush.msra.mxu0 0.0
  %1542 = vmatpush.msra.mxu0 0.0
  %1543 = vmatpush.msra.mxu0 0.0
  %1544 = vmatpush.msra.mxu0 0.0
  %1545 = vmatpush.msra.mxu0 0.0
  %1546 = vmatpush.msra.mxu0 0.0
  %1547 = vmatpush.msra.mxu0 %v1518
  %1548 = vmatpush.msra.mxu0 %v1515
  %1549 = vmatpush.msra.mxu0 %v1512
  %1550 = vmatpush.msra.mxu0 %v1509
  %1551 = vmatpush.msra.mxu0 %v1502
  %1552 = vmatmul.f32.gmra.mxu0 %v1531
  %v1553 = vpop.f32.mrf.mxu0
  %v1554 = vadd.f32 %v1523, %v1553
  %1555 = vmatmul.f32.gmra.mxu0 %v1534
  %v1556 = vpop.f32.mrf.mxu0
  %v1557 = vadd.f32 %v1528, %v1556
  %1558 = vdwg.mxu0
  %v1559 = vmax.f32 %v1554, 0.0
  %v1560 = vmax.f32 %v1557, 0.0
  %1563 = vrot.lane.b32.xlu0 %v1559, 124
  %v1564 = vpop.permute.xlu0 %1563
  %1565 = vrot.lane.b32.xlu0 %v1560, 124
  %v1566 = vpop.permute.xlu0 %1565
  %1569 = vrot.lane.b32.xlu0 %v1559, 120
  %v1570 = vpop.permute.xlu0 %1569
  %1571 = vrot.lane.b32.xlu0 %v1560, 120
  %v1572 = vpop.permute.xlu0 %1571
  %1575 = vrot.lane.b32.xlu0 %v1559, 116
  %v1576 = vpop.permute.xlu0 %1575
  %1577 = vrot.lane.b32.xlu0 %v1560, 116
  %v1578 = vpop.permute.xlu0 %1577
  %v1581 = vrot.slane %v1570, 4
  %v1582 = vsel %vm173, %v1581, %v1559
  %v1583 = vrot.slane %v1559, 4
  %v1584 = vsel %vm173, %v1570, %v1583
  %v1586 = vunpack.c.l.s4 1983009808
  %v1587 = vunpack.c.0.s8 %v1586
  %v1588 = vperm.slane %v1582, %v1587
  %v1590 = vunpack.c.l.s4 1983009808
  %v1591 = vunpack.c.0.s8 %v1590
  %v1592 = vperm.slane %v1584, %v1591
  %v1593 = vrot.slane %v1576, 4
  %v1594 = vsel %vm173, %v1593, %v1564
  %v1595 = vrot.slane %v1564, 4
  %v1596 = vsel %vm173, %v1576, %v1595
  %v1598 = vunpack.c.l.s4 1983009808
  %v1599 = vunpack.c.0.s8 %v1598
  %v1600 = vperm.slane %v1594, %v1599
  %v1602 = vunpack.c.l.s4 1983009808
  %v1603 = vunpack.c.0.s8 %v1602
  %v1604 = vperm.slane %v1596, %v1603
  %v1605 = vrot.slane %v1600, 4
  %v1606 = vsel %vm173, %v1605, %v1588
  %v1607 = vrot.slane %v1588, 4
  %v1608 = vsel %vm173, %v1600, %v1607
  %v1610 = vunpack.c.l.s4 1934713408
  %v1611 = vunpack.c.0.s8 %v1610
  %v1612 = vperm.slane %v1606, %v1611
  %v1614 = vunpack.c.l.s4 1934713408
  %v1615 = vunpack.c.0.s8 %v1614
  %v1616 = vperm.slane %v1608, %v1615
  %v1617 = vrot.slane %v1604, 4
  %v1618 = vsel %vm173, %v1617, %v1592
  %v1619 = vrot.slane %v1592, 4
  %v1620 = vsel %vm173, %v1604, %v1619
  %v1622 = vunpack.c.l.s4 1934713408
  %v1623 = vunpack.c.0.s8 %v1622
  %v1624 = vperm.slane %v1618, %v1623
  %v1626 = vunpack.c.l.s4 1934713408
  %v1627 = vunpack.c.0.s8 %v1626
  %v1628 = vperm.slane %v1620, %v1627
  %v1629 = vrot.slane %v1612, 4
  %v1630 = vsel %vm173, 0.0, %v1629
  %v1631 = vrot.slane %v1616, 4
  %v1632 = vsel %vm173, 0.0, %v1631
  %v1633 = vrot.slane %v1624, 4
  %v1634 = vsel %vm173, 0.0, %v1633
  %v1635 = vrot.slane %v1628, 4
  %v1636 = vsel %vm173, 0.0, %v1635
  %v1637 = vrot.slane %v1572, 4
  %v1638 = vsel %vm173, %v1637, %v1560
  %v1639 = vrot.slane %v1560, 4
  %v1640 = vsel %vm173, %v1572, %v1639
  %v1642 = vunpack.c.l.s4 1983009808
  %v1643 = vunpack.c.0.s8 %v1642
  %v1644 = vperm.slane %v1638, %v1643
  %v1646 = vunpack.c.l.s4 1983009808
  %v1647 = vunpack.c.0.s8 %v1646
  %v1648 = vperm.slane %v1640, %v1647
  %v1649 = vrot.slane %v1578, 4
  %v1650 = vsel %vm173, %v1649, %v1566
  %v1651 = vrot.slane %v1566, 4
  %v1652 = vsel %vm173, %v1578, %v1651
  %v1654 = vunpack.c.l.s4 1983009808
  %v1655 = vunpack.c.0.s8 %v1654
  %v1656 = vperm.slane %v1650, %v1655
  %v1658 = vunpack.c.l.s4 1983009808
  %v1659 = vunpack.c.0.s8 %v1658
  %v1660 = vperm.slane %v1652, %v1659
  %v1661 = vrot.slane %v1656, 4
  %v1662 = vsel %vm173, %v1661, %v1644
  %v1663 = vrot.slane %v1644, 4
  %v1664 = vsel %vm173, %v1656, %v1663
  %v1666 = vunpack.c.l.s4 1934713408
  %v1667 = vunpack.c.0.s8 %v1666
  %v1668 = vperm.slane %v1662, %v1667
  %v1670 = vunpack.c.l.s4 1934713408
  %v1671 = vunpack.c.0.s8 %v1670
  %v1672 = vperm.slane %v1664, %v1671
  %v1673 = vrot.slane %v1660, 4
  %v1674 = vsel %vm173, %v1673, %v1648
  %v1675 = vrot.slane %v1648, 4
  %v1676 = vsel %vm173, %v1660, %v1675
  %v1678 = vunpack.c.l.s4 1934713408
  %v1679 = vunpack.c.0.s8 %v1678
  %v1680 = vperm.slane %v1674, %v1679
  %v1682 = vunpack.c.l.s4 1934713408
  %v1683 = vunpack.c.0.s8 %v1682
  %v1684 = vperm.slane %v1676, %v1683
  %v1685 = vrot.slane %v1668, 4
  %v1686 = vsel %vm173, 0.0, %v1685
  %v1687 = vrot.slane %v1672, 4
  %v1688 = vsel %vm173, 0.0, %v1687
  %v1689 = vrot.slane %v1680, 4
  %v1690 = vsel %vm173, 0.0, %v1689
  %v1691 = vrot.slane %v1684, 4
  %v1692 = vsel %vm173, 0.0, %v1691
  %1709 = vrot.lane.b32.xlu0 %v1612, 126
  %v1710 = vpop.permute.xlu0 %1709
  %1711 = vrot.lane.b32.xlu0 %v1630, 126
  %v1712 = vpop.permute.xlu0 %1711
  %1713 = vrot.lane.b32.xlu0 %v1616, 126
  %v1714 = vpop.permute.xlu0 %1713
  %1715 = vrot.lane.b32.xlu0 %v1632, 126
  %v1716 = vpop.permute.xlu0 %1715
  %1717 = vrot.lane.b32.xlu0 %v1624, 126
  %v1718 = vpop.permute.xlu0 %1717
  %1719 = vrot.lane.b32.xlu0 %v1634, 126
  %v1720 = vpop.permute.xlu0 %1719
  %1721 = vrot.lane.b32.xlu0 %v1628, 126
  %v1722 = vpop.permute.xlu0 %1721
  %1723 = vrot.lane.b32.xlu0 %v1636, 126
  %v1724 = vpop.permute.xlu0 %1723
  %1725 = vrot.lane.b32.xlu0 %v1668, 126
  %v1726 = vpop.permute.xlu0 %1725
  %1727 = vrot.lane.b32.xlu0 %v1686, 126
  %v1728 = vpop.permute.xlu0 %1727
  %1729 = vrot.lane.b32.xlu0 %v1672, 126
  %v1730 = vpop.permute.xlu0 %1729
  %1731 = vrot.lane.b32.xlu0 %v1688, 126
  %v1732 = vpop.permute.xlu0 %1731
  %1733 = vrot.lane.b32.xlu0 %v1680, 126
  %v1734 = vpop.permute.xlu0 %1733
  %1735 = vrot.lane.b32.xlu0 %v1690, 126
  %v1736 = vpop.permute.xlu0 %1735
  %1737 = vrot.lane.b32.xlu0 %v1684, 126
  %v1738 = vpop.permute.xlu0 %1737
  %1739 = vrot.lane.b32.xlu0 %v1692, 126
  %v1740 = vpop.permute.xlu0 %1739
  %v1757 = vmax.f32 %v1612, %v1710
  %v1758 = vmax.f32 %v1630, %v1712
  %v1759 = vmax.f32 %v1616, %v1714
  %v1760 = vmax.f32 %v1632, %v1716
  %v1761 = vmax.f32 %v1624, %v1718
  %v1762 = vmax.f32 %v1634, %v1720
  %v1763 = vmax.f32 %v1628, %v1722
  %v1764 = vmax.f32 %v1636, %v1724
  %v1765 = vmax.f32 %v1668, %v1726
  %v1766 = vmax.f32 %v1686, %v1728
  %v1767 = vmax.f32 %v1672, %v1730
  %v1768 = vmax.f32 %v1688, %v1732
  %v1769 = vmax.f32 %v1680, %v1734
  %v1770 = vmax.f32 %v1690, %v1736
  %v1771 = vmax.f32 %v1684, %v1738
  %v1772 = vmax.f32 %v1692, %v1740
  %vm1773 = vcmask 11264
  %1774 = vst.msk [vmem:[%s7] sm:$0xf] %vm1773, %v1757
  %1775 = vst.msk [vmem:[%s7 + $0x4] sm:$0xf] %vm1773, %v1758
  %1776 = vst.msk [vmem:[%s7 + $0x8] sm:$0xf] %vm1773, %v1759
  %1777 = vst.msk [vmem:[%s7 + $0xc] sm:$0xf] %vm1773, %v1760
  %1778 = vst.msk [vmem:[%s7 + $0x10] sm:$0xf] %vm1773, %v1761
  %1779 = vst.msk [vmem:[%s7 + $0x14] sm:$0xf] %vm1773, %v1762
  %1780 = vst.msk [vmem:[%s7 + $0x18] sm:$0xf] %vm1773, %v1763
  %1781 = vst.msk [vmem:[%s7 + $0x1c] sm:$0xf] %vm1773, %v1764
  %1782 = vst.msk [vmem:[%s7 + $0x20] sm:$0xf] %vm1773, %v1765
  %1783 = vst.msk [vmem:[%s7 + $0x24] sm:$0xf] %vm1773, %v1766
  %1784 = vst.msk [vmem:[%s7 + $0x28] sm:$0xf] %vm1773, %v1767
  %1785 = vst.msk [vmem:[%s7 + $0x2c] sm:$0xf] %vm1773, %v1768
  %1786 = vst.msk [vmem:[%s7 + $0x30] sm:$0xf] %vm1773, %v1769
  %1787 = vst.msk [vmem:[%s7 + $0x34] sm:$0xf] %vm1773, %v1770
  %1788 = vst.msk [vmem:[%s7 + $0x38] sm:$0xf] %vm1773, %v1771
  %1789 = vst.msk [vmem:[%s7 + $0x3c] sm:$0xf] %vm1773, %v1772
  // Predicated region
  $region30: #{tpu_custom_call.1} parent=0 // pred_check
    _
  $region31: #{tpu_custom_call.1} parent=0 // pred_check_branch
    %1791 = sbr.rel (0) target = $region33
  $region32: #{tpu_custom_call.1} parent=0 // pred_region
    _
  $region33: #{tpu_custom_call.1} parent=0 // pred_fallthru
    _
  // Predicated region
  $region34: #{tpu_custom_call.1} parent=0 // pred_check
    _
  $region35: #{tpu_custom_call.1} parent=0 // pred_check_branch
    %1793 = sbr.rel (0) target = $region37
  $region36: #{tpu_custom_call.1} parent=0 // pred_region
    _
  $region37: #{tpu_custom_call.1} parent=0 // pred_fallthru
    _

</llo_original>
